<compile_context>
chip_gen: v7x
topology: tpu7x:2x2x1
jax: 0.10.0
libtpu: 0.0.40
codegen_flags: <defaults>
</compile_context>

<pallas_src>
import functools

import jax
import jax.numpy as jnp
from jax.experimental import pallas as pl
from jax.experimental.pallas import tpu as pltpu


# -----------------------------------------------------------------------------
# Helpers
# -----------------------------------------------------------------------------
def _scale_norm(x, scale, eps):
    # norm_factor = scale / clamp(||x||_2 over last dim, min=eps); return x * norm_factor
    nrm = jnp.sqrt(jnp.sum(x * x, axis=-1, keepdims=True))
    nrm = jnp.maximum(nrm, eps)
    return x * (scale / nrm)


def _largest_divisor_leq(n, k):
    k = max(1, min(n, k))
    while n % k:
        k -= 1
    return k


# -----------------------------------------------------------------------------
# Kernel: the whole encoder stack, one (batch_tile, layer) grid step at a time
# -----------------------------------------------------------------------------
def _encoder_stack_kernel(
    scales_ref,                       # SMEM (2L,) f32: [scale1_0, scale2_0, scale1_1, ...]
    x_ref,                            # (Bt, S, D)  input activations (f32)
    wqkv_ref, bqkv_ref,               # (D, 3D) compute dtype, (1, 3D) f32
    wo_ref, bo_ref,                   # (D, D), (1, D)
    w1_ref, b1_ref,                   # (D, F), (1, F)
    w2_ref, b2_ref,                   # (F, D), (1, D)
    out_ref,                          # (Bt, S, D)  activation carry + final output (f32)
    *maybe_attn,                      # optional (Bt, H, S, S) attention weights
    num_heads, num_layers, eps, final_scale, compute_dtype,
):
    attn_ref = maybe_attn[0] if maybe_attn else None
    l = pl.program_id(1)
    cdt = compute_dtype

    Bt, S, D = out_ref.shape
    H = num_heads
    dh = D // H
    M = Bt * S
    inv_sqrt_dh = 1.0 / (dh ** 0.5)

    # --- carry: on the first layer, load the input block into the resident
    #     output block, which then holds the activation across the layer axis.
    @pl.when(l == 0)
    def _():
        out_ref[...] = x_ref[...].astype(out_ref.dtype)

    x = out_ref[...].astype(jnp.float32).reshape(M, D)

    # --- scale_norm_1 (skip is taken AFTER the norm, matching the reference) ---
    xn = _scale_norm(x, scales_ref[2 * l], eps)
    skip1 = xn

    # --- fused Q/K/V projection: one MXU pass over the (D, 3D) weight ---
    qkv = jnp.dot(xn.astype(cdt), wqkv_ref[...],
                  preferred_element_type=jnp.float32) + bqkv_ref[...]

    # --- scaled dot-product attention, per head (static lane slices; no
    #     sublane-crossing head transposes) ---
    ctx_pieces = []
    for h in range(H):
        lo, hi = h * dh, (h + 1) * dh
        qh = qkv[:, 0 * D + lo:0 * D + hi].reshape(Bt, S, dh).astype(cdt)
        kh = qkv[:, 1 * D + lo:1 * D + hi].reshape(Bt, S, dh).astype(cdt)
        vh = qkv[:, 2 * D + lo:2 * D + hi].reshape(Bt, S, dh).astype(cdt)

        s = jnp.einsum('bqd,bkd->bqk', qh, kh,
                       preferred_element_type=jnp.float32) * inv_sqrt_dh
        s = s - jnp.max(s, axis=-1, keepdims=True)
        e = jnp.exp(s)
        # exact denominator: these weights are returned to the caller and must
        # sum to 1 per row, matching torch.softmax.
        w = e / jnp.sum(e, axis=-1, keepdims=True)

        if attn_ref is not None:
            attn_ref[:, h, :, :] = w.astype(attn_ref.dtype)

        ctx_h = jnp.einsum('bqk,bkd->bqd', w.astype(cdt), vh,
                           preferred_element_type=jnp.float32)    # (Bt, S, dh)
        ctx_pieces.append(ctx_h.reshape(M, dh))

    ctx = jnp.concatenate(ctx_pieces, axis=-1) if H > 1 else ctx_pieces[0]

    # --- output projection + residual ---
    attn_out = jnp.dot(ctx.astype(cdt), wo_ref[...],
                       preferred_element_type=jnp.float32) + bo_ref[...]
    x1 = skip1 + attn_out

    # --- scale_norm_2 + feed-forward + residual ---
    x2 = _scale_norm(x1, scales_ref[2 * l + 1], eps)
    h1 = jnp.maximum(jnp.dot(x2.astype(cdt), w1_ref[...],
                             preferred_element_type=jnp.float32) + b1_ref[...], 0.0)
    ff = jnp.dot(h1.astype(cdt), w2_ref[...],
                 preferred_element_type=jnp.float32) + b2_ref[...]
    xo = x2 + ff

    # --- write back the carried activation; the encoder's final ScaleNorm is
    #     fused into the last layer's step ---
    @pl.when(l < num_layers - 1)
    def _():
        out_ref[...] = xo.reshape(Bt, S, D).astype(out_ref.dtype)

    @pl.when(l == num_layers - 1)
    def _():
        out_ref[...] = _scale_norm(xo, final_scale, eps).reshape(Bt, S, D).astype(out_ref.dtype)


# -----------------------------------------------------------------------------
# Wrapper
# -----------------------------------------------------------------------------
def transformer_encoder(x, params, *, num_heads, eps=1e-5,
                        compute_dtype=jnp.bfloat16, return_attn=True,
                        attn_dtype=jnp.bfloat16, batch_tile=None):
    """x: (seq_len, batch, d_model) -- same convention as the PyTorch module.

    Returns (out (S, B, D) float32, [attn_weights (B*num_heads, S, S)] per layer or None).
    """
    S, B, D = x.shape
    H = num_heads
    layers = params["layers"]
    L = len(layers)
    F = layers[0]["w1"].shape[0]

    # --- stack & pre-transpose weights (kernel computes y = x @ W_t + b) ---
    wqkv = jnp.stack([jnp.concatenate([lp["wq"].T, lp["wk"].T, lp["wv"].T], axis=1)
                      for lp in layers]).astype(compute_dtype)            # (L, D, 3D)
    bqkv = jnp.stack([jnp.concatenate([lp["bq"], lp["bk"], lp["bv"]], axis=1)
                      for lp in layers]).astype(jnp.float32)              # (L, 1, 3D)
    wo = jnp.stack([lp["wo"].T for lp in layers]).astype(compute_dtype)   # (L, D, D)
    bo = jnp.stack([lp["bo"] for lp in layers]).astype(jnp.float32)       # (L, 1, D)
    w1 = jnp.stack([lp["w1"].T for lp in layers]).astype(compute_dtype)   # (L, D, F)
    b1 = jnp.stack([lp["b1"] for lp in layers]).astype(jnp.float32)       # (L, 1, F)
    w2 = jnp.stack([lp["w2"].T for lp in layers]).astype(compute_dtype)   # (L, F, D)
    b2 = jnp.stack([lp["b2"] for lp in layers]).astype(jnp.float32)       # (L, 1, D)

    # ScaleNorm scales, flattened to 1D for the scalar-prefetch (SMEM) path.
    scales_list = []
    for lp in layers:
        scales_list += [float(lp["scale1"]), float(lp["scale2"])]
    scales = jnp.array(scales_list, jnp.float32)                          # (2L,)

    xb = jnp.transpose(x, (1, 0, 2)).astype(jnp.float32)                  # (B, S, D) f32 carry

    cdt_bytes = jnp.dtype(compute_dtype).itemsize
    attn_bytes = jnp.dtype(attn_dtype).itemsize if return_attn else 0

    # --- physical VMEM of this generation (v5e/v6e: 128 MiB, v7x: 64 MiB/TC) ---
    try:
        vmem_cap = int(getattr(pltpu.get_tpu_info(), "vmem_capacity_bytes", 64 * 2 ** 20))
    except Exception:  # pragma: no cover - conservative fallback
        vmem_cap = 64 * 2 ** 20

    def _vmem_need(bt):
        """Honest per-step VMEM footprint estimate (double buffering + live f32 temps)."""
        M = bt * S
        f32 = 4
        blocks = 2 * bt * S * D * f32                       # x input block (double-buffered)
        blocks += 2 * bt * S * D * f32                      # activation carry / output block
        blocks += 2 * bt * H * S * S * attn_bytes           # attention-weights output block
        weights = 2 * ((D * 3 * D + D * D + D * F + F * D) * cdt_bytes
                       + (5 * D + F) * f32)                 # streamed weights + biases (x2 bufs)
        inter = M * (9 * D + F) * f32                       # qkv, ctx pieces, residuals, h1, ff
        inter += M * (3 * D + F) * cdt_bytes                # bf16 copies feeding the MXU
        inter += 3 * bt * S * S * f32                       # per-head scores / exp / weights
        return blocks + weights + inter

    vmem_budget = int(0.70 * vmem_cap)                      # leave headroom for Mosaic scratch

    # --- batch tiling: target M = bt*S ~= 512 so streamed weights are reused
    #     across many rows; keep >=2 tiles (v7x megacore) when it does not
    #     starve the MXU M dim; shrink against the VMEM budget. ---
    if batch_tile is None:
        bt = _largest_divisor_leq(B, max(1, 512 // max(S, 1)))
        if B // bt < 2 and B >= 2 and (B // 2) * S >= 256:
            bt = _largest_divisor_leq(B, B // 2)
        while bt > 1 and _vmem_need(bt) > vmem_budget:
            bt = _largest_divisor_leq(B, bt - 1)
    else:
        bt = batch_tile
        assert B % bt == 0
    nb = B // bt
    grid = (nb, L)

    vmem_limit = int(max(32 * 2 ** 20, min(0.85 * vmem_cap, 110 * 2 ** 20)))

    kernel = functools.partial(
        _encoder_stack_kernel,
        num_heads=H, num_layers=L, eps=eps,
        final_scale=float(params["final_scale"]),
        compute_dtype=compute_dtype)

    x_spec = pl.BlockSpec((bt, S, D), lambda b, l, s: (b, 0, 0))
    w_specs = [
        pl.BlockSpec((None, D, 3 * D), lambda b, l, s: (l, 0, 0)),
        pl.BlockSpec((None, 1, 3 * D), lambda b, l, s: (l, 0, 0)),
        pl.BlockSpec((None, D, D), lambda b, l, s: (l, 0, 0)),
        pl.BlockSpec((None, 1, D), lambda b, l, s: (l, 0, 0)),
        pl.BlockSpec((None, D, F), lambda b, l, s: (l, 0, 0)),
        pl.BlockSpec((None, 1, F), lambda b, l, s: (l, 0, 0)),
        pl.BlockSpec((None, F, D), lambda b, l, s: (l, 0, 0)),
        pl.BlockSpec((None, 1, D), lambda b, l, s: (l, 0, 0)),
    ]

    out_shapes = [jax.ShapeDtypeStruct((B, S, D), jnp.float32)]
    out_specs = [pl.BlockSpec((bt, S, D), lambda b, l, s: (b, 0, 0))]
    if return_attn:
        out_shapes.append(jax.ShapeDtypeStruct((L, B, H, S, S), attn_dtype))
        out_specs.append(pl.BlockSpec((None, bt, H, S, S), lambda b, l, s: (l, b, 0, 0, 0)))

    results = pl.pallas_call(
        kernel,
        out_shape=tuple(out_shapes),
        grid_spec=pltpu.PrefetchScalarGridSpec(
            num_scalar_prefetch=1,
            grid=grid,
            in_specs=[x_spec] + w_specs,
            out_specs=tuple(out_specs),
        ),
        compiler_params=pltpu.CompilerParams(
            dimension_semantics=("parallel", "arbitrary"),
            vmem_limit_bytes=vmem_limit),
    )(scales, xb, wqkv, bqkv, wo, bo, w1, b1, w2, b2)

    out_b = results[0]
    out = jnp.transpose(out_b, (1, 0, 2))               # back to (S, B, D)
    if return_attn:
        attn_all = results[1]                            # (L, B, H, S, S)
        attn_list = [attn_all[i].reshape(B * H, S, S) for i in range(L)]
        return out, attn_list
    return out, None


# -----------------------------------------------------------------------------
# Pure-JAX (f32) reference, mirroring the PyTorch module exactly
# -----------------------------------------------------------------------------
def _reference_forward(x, params, *, num_heads, eps=1e-5):
    S, B, D = x.shape
    H = num_heads
    dh = D // H
    attn_list = []
    for p in params["layers"]:
        nrm = jnp.maximum(jnp.linalg.norm(x, axis=-1, keepdims=True), eps)
        xn = x * (p["scale1"] / nrm)
        skip = xn
        q = xn @ p["wq"].T + p["bq"][0]
        k = xn @ p["wk"].T + p["bk"][0]
        v = xn @ p["wv"].T + p["bv"][0]

        def sh(t):  # (S, B, D) -> (B*H, S, dh), matching torch's view/transpose
            return t.reshape(S, B * H, dh).transpose(1, 0, 2)

        qh, kh, vh = sh(q), sh(k), sh(v)
        scores = jnp.einsum('msd,mtd->mst', qh, kh) / (dh ** 0.5)
        w = jax.nn.softmax(scores, axis=-1)
        attn_list.append(w)
        o = jnp.einsum('mst,mtd->msd', w, vh)
        o = o.transpose(1, 0, 2).reshape(S, B, D)
        o = o @ p["wo"].T + p["bo"][0]
        x1 = skip + o
        nrm2 = jnp.maximum(jnp.linalg.norm(x1, axis=-1, keepdims=True), eps)
        x2 = x1 * (p["scale2"] / nrm2)
        h1 = jnp.maximum(x2 @ p["w1"].T + p["b1"][0], 0.0)
        ff = h1 @ p["w2"].T + p["b2"][0]
        x = x2 + ff
    nrm = jnp.maximum(jnp.linalg.norm(x, axis=-1, keepdims=True), eps)
    x = x * (params["final_scale"] / nrm)
    return x, attn_list


# -----------------------------------------------------------------------------
# Deterministic parameter init (PyTorch conventions: W is (out, in), y = x W^T + b)
# -----------------------------------------------------------------------------
def init_params(key, num_layers, d_model, ff_dim):
    layers = []
    for li in range(num_layers):
        key, *ks = jax.random.split(key, 13)
        std = 0.02
        layer = {
            "scale1": float(d_model ** 0.5) * (1.0 + 0.03 * li),
            "scale2": float(d_model ** 0.5) * (1.0 + 0.05 * li),
            "wq": std * jax.random.normal(ks[0], (d_model, d_model), jnp.float32),
            "bq": std * jax.random.normal(ks[1], (1, d_model), jnp.float32),
            "wk": std * jax.random.normal(ks[2], (d_model, d_model), jnp.float32),
            "bk": std * jax.random.normal(ks[3], (1, d_model), jnp.float32),
            "wv": std * jax.random.normal(ks[4], (d_model, d_model), jnp.float32),
            "bv": std * jax.random.normal(ks[5], (1, d_model), jnp.float32),
            "wo": std * jax.random.normal(ks[6], (d_model, d_model), jnp.float32),
            "bo": std * jax.random.normal(ks[7], (1, d_model), jnp.float32),
            "w1": std * jax.random.normal(ks[8], (ff_dim, d_model), jnp.float32),
            "b1": std * jax.random.normal(ks[9], (1, ff_dim), jnp.float32),
            "w2": std * jax.random.normal(ks[10], (d_model, ff_dim), jnp.float32),
            "b2": std * jax.random.normal(ks[11], (1, d_model), jnp.float32),
        }
        layers.append(layer)
    return {"layers": layers, "final_scale": float(d_model ** 0.5)}


# -----------------------------------------------------------------------------
if __name__ == "__main__":
    num_layers = 2
    num_heads = 4
    d_model = 32
    ff_dim = 64
    seq_len = 8
    batch = 2

    key = jax.random.PRNGKey(0)
    key, kx = jax.random.split(key)
    x = jax.random.normal(kx, (seq_len, batch, d_model), jnp.float32)
    params = init_params(key, num_layers, d_model, ff_dim)

    out, attn_list = transformer_encoder(x, params, num_heads=num_heads)
    out = jax.block_until_ready(out)
    attn_list = [jax.block_until_ready(a) for a in attn_list]

    assert out.shape == (seq_len, batch, d_model)
    assert len(attn_list) == num_layers
    assert attn_list[0].shape == (batch * num_heads, seq_len, seq_len)

    # loose numerical check vs. the f32 reference (kernel uses bf16 MXU matmuls
    # and returns bf16 attention weights)
    ref_out, ref_attn = _reference_forward(x, params, num_heads=num_heads)
    assert jnp.allclose(out, ref_out, atol=5e-2, rtol=5e-2)
    for a, ra in zip(attn_list, ref_attn):
        assert jnp.allclose(a.astype(jnp.float32), ra, atol=5e-2, rtol=5e-2)

    print("KERNEL_OK")
</pallas_src>

<mosaic_0001>
module attributes {stable_mosaic.version = 11 : i64} {
  func.func @_encoder_stack_kernel(%arg0: i32, %arg1: i32, %arg2: memref<4xf32, #tpu.memory_space<smem>>, %arg3: memref<2x8x32xf32, #tpu.memory_space<vmem>>, %arg4: memref<1x32x96xbf16, #tpu.memory_space<vmem>>, %arg5: memref<1x1x96xf32, #tpu.memory_space<vmem>>, %arg6: memref<1x32x32xbf16, #tpu.memory_space<vmem>>, %arg7: memref<1x1x32xf32, #tpu.memory_space<vmem>>, %arg8: memref<1x32x64xbf16, #tpu.memory_space<vmem>>, %arg9: memref<1x1x64xf32, #tpu.memory_space<vmem>>, %arg10: memref<1x64x32xbf16, #tpu.memory_space<vmem>>, %arg11: memref<1x1x32xf32, #tpu.memory_space<vmem>>, %arg12: memref<2x8x32xf32, #tpu.memory_space<vmem>>, %arg13: memref<1x2x4x8x8xbf16, #tpu.memory_space<vmem>>) attributes {dimension_semantics = [#tpu.dimension_semantics<parallel>, #tpu.dimension_semantics<arbitrary>], iteration_bounds = array<i64: 1, 2>, scalar_prefetch = 1 : i64, scratch_operands = 0 : i64, tpu.core_type = #tpu.core_type<tc>, window_params = [{transform_indices = @transform_0, window_bounds = array<i64: 2, 8, 32>}, {transform_indices = @transform_1, window_bounds = array<i64: 1, 32, 96>}, {transform_indices = @transform_2, window_bounds = array<i64: 1, 1, 96>}, {transform_indices = @transform_3, window_bounds = array<i64: 1, 32, 32>}, {transform_indices = @transform_4, window_bounds = array<i64: 1, 1, 32>}, {transform_indices = @transform_5, window_bounds = array<i64: 1, 32, 64>}, {transform_indices = @transform_6, window_bounds = array<i64: 1, 1, 64>}, {transform_indices = @transform_7, window_bounds = array<i64: 1, 64, 32>}, {transform_indices = @transform_8, window_bounds = array<i64: 1, 1, 32>}, {transform_indices = @transform_9, window_bounds = array<i64: 2, 8, 32>}, {transform_indices = @transform_10, window_bounds = array<i64: 1, 2, 4, 8, 8>}]} {
    %c0_i32 = arith.constant 0 : i32
    %0 = arith.cmpi eq, %arg1, %c0_i32 : i32
    %1 = arith.extui %0 : i1 to i32
    %c0_i32_0 = arith.constant 0 : i32
    %2 = arith.cmpi ne, %1, %c0_i32_0 : i32
    scf.if %2 {
      %c0_77 = arith.constant 0 : index
      %c0_78 = arith.constant 0 : index
      %c0_79 = arith.constant 0 : index
      %187 = vector.load %arg3[%c0_77, %c0_78, %c0_79] : memref<2x8x32xf32, #tpu.memory_space<vmem>>, vector<2x8x32xf32>
      %c0_80 = arith.constant 0 : index
      %c0_81 = arith.constant 0 : index
      %c0_82 = arith.constant 0 : index
      %188 = vector.load %arg12[%c0_80, %c0_81, %c0_82] : memref<2x8x32xf32, #tpu.memory_space<vmem>>, vector<2x8x32xf32>
      tpu.vector_store %arg12[%c0_80, %c0_81, %c0_82], %187 {strides = array<i32>} : memref<2x8x32xf32, #tpu.memory_space<vmem>>, vector<2x8x32xf32>,
    } else {
    }
    %c0 = arith.constant 0 : index
    %c0_1 = arith.constant 0 : index
    %c0_2 = arith.constant 0 : index
    %3 = vector.load %arg12[%c0, %c0_1, %c0_2] : memref<2x8x32xf32, #tpu.memory_space<vmem>>, vector<2x8x32xf32>
    %4 = vector.shape_cast %3 : vector<2x8x32xf32> to vector<16x32xf32>
    %c2_i32 = arith.constant 2 : i32
    %5 = arith.muli %c2_i32, %arg1 : i32
    %6 = arith.index_cast %5 : i32 to index
    %7 = memref.load %arg2[%6] : memref<4xf32, #tpu.memory_space<smem>>
    %8 = arith.mulf %4, %4 : vector<16x32xf32>
    %cst = arith.constant dense<0.000000e+00> : vector<16xf32>
    %9 = vector.multi_reduction <add>, %8, %cst [1] : vector<16x32xf32> to vector<16xf32>
    %10 = vector.shape_cast %9 : vector<16xf32> to vector<16x1xf32>
    %11 = math.sqrt %10 : vector<16x1xf32>
    %cst_3 = arith.constant 9.99999974E-6 : f32
    %12 = vector.broadcast %cst_3 : f32 to vector<16x1xf32>
    %13 = arith.maximumf %11, %12 : vector<16x1xf32>
    %14 = vector.broadcast %7 : f32 to vector<16x1xf32>
    %15 = arith.divf %14, %13 : vector<16x1xf32>
    %16 = vector.broadcast %15 : vector<16x1xf32> to vector<16x32xf32>
    %17 = arith.mulf %4, %16 : vector<16x32xf32>
    %18 = arith.truncf %17 : vector<16x32xf32> to vector<16x32xbf16>
    %c0_4 = arith.constant 0 : index
    %c0_5 = arith.constant 0 : index
    %c0_6 = arith.constant 0 : index
    %19 = vector.load %arg4[%c0_4, %c0_5, %c0_6] : memref<1x32x96xbf16, #tpu.memory_space<vmem>>, vector<1x32x96xbf16>
    %20 = vector.shape_cast %19 : vector<1x32x96xbf16> to vector<32x96xbf16>
    %cst_7 = arith.constant dense<0.000000e+00> : vector<16x96xf32>
    %21 = tpu.matmul %18, %20, %cst_7 {dimension_numbers = #tpu.dot_dimension_numbers<[1], [0], [0], [1], [0, 0, 1, 1], [], []>} : vector<16x32xbf16>, vector<32x96xbf16>, vector<16x96xf32> -> vector<16x96xf32>
    %c0_8 = arith.constant 0 : index
    %c0_9 = arith.constant 0 : index
    %c0_10 = arith.constant 0 : index
    %22 = vector.load %arg5[%c0_8, %c0_9, %c0_10] : memref<1x1x96xf32, #tpu.memory_space<vmem>>, vector<1x1x96xf32>
    %23 = vector.shape_cast %22 : vector<1x1x96xf32> to vector<1x96xf32>
    %24 = vector.broadcast %23 : vector<1x96xf32> to vector<16x96xf32>
    %25 = arith.addf %21, %24 : vector<16x96xf32>
    %26 = vector.extract_strided_slice %25 {offsets = [0, 0], sizes = [16, 8], strides = [1, 1]} : vector<16x96xf32> to vector<16x8xf32>
    %27 = vector.shape_cast %26 : vector<16x8xf32> to vector<2x8x8xf32>
    %28 = arith.truncf %27 : vector<2x8x8xf32> to vector<2x8x8xbf16>
    %29 = vector.extract_strided_slice %25 {offsets = [0, 32], sizes = [16, 8], strides = [1, 1]} : vector<16x96xf32> to vector<16x8xf32>
    %30 = vector.shape_cast %29 : vector<16x8xf32> to vector<2x8x8xf32>
    %31 = arith.truncf %30 : vector<2x8x8xf32> to vector<2x8x8xbf16>
    %32 = vector.extract_strided_slice %25 {offsets = [0, 64], sizes = [16, 8], strides = [1, 1]} : vector<16x96xf32> to vector<16x8xf32>
    %33 = vector.shape_cast %32 : vector<16x8xf32> to vector<2x8x8xf32>
    %34 = arith.truncf %33 : vector<2x8x8xf32> to vector<2x8x8xbf16>
    "tpu.trace_start"() <{level = 10 : i32, message = "bqd,bkd->bqk"}> : () -> ()
    %cst_11 = arith.constant dense<0.000000e+00> : vector<2x8x8xf32>
    %35 = tpu.matmul %28, %31, %cst_11 {dimension_numbers = #tpu.dot_dimension_numbers<[2], [2], [1], [1], [0, 0, 0, 1, 1, 1], [0], [0]>} : vector<2x8x8xbf16>, vector<2x8x8xbf16>, vector<2x8x8xf32> -> vector<2x8x8xf32>
    "tpu.trace_stop"() : () -> ()
    %cst_12 = arith.constant 0.353553385 : f32
    %36 = vector.broadcast %cst_12 : f32 to vector<2x8x8xf32>
    %37 = arith.mulf %35, %36 : vector<2x8x8xf32>
    %cst_13 = arith.constant dense<0xFF800000> : vector<2x8xf32>
    %38 = vector.multi_reduction <maximumf>, %37, %cst_13 [2] : vector<2x8x8xf32> to vector<2x8xf32>
    %39 = vector.shape_cast %38 : vector<2x8xf32> to vector<2x8x1xf32>
    %40 = vector.broadcast %39 : vector<2x8x1xf32> to vector<2x8x8xf32>
    %41 = arith.subf %37, %40 : vector<2x8x8xf32>
    %42 = math.exp %41 : vector<2x8x8xf32>
    %cst_14 = arith.constant dense<0.000000e+00> : vector<2x8xf32>
    %43 = vector.multi_reduction <add>, %42, %cst_14 [2] : vector<2x8x8xf32> to vector<2x8xf32>
    %44 = vector.shape_cast %43 : vector<2x8xf32> to vector<2x8x1xf32>
    %45 = vector.broadcast %44 : vector<2x8x1xf32> to vector<2x8x8xf32>
    %46 = arith.divf %42, %45 : vector<2x8x8xf32>
    %47 = arith.truncf %46 : vector<2x8x8xf32> to vector<2x8x8xbf16>
    %c0_15 = arith.constant 0 : index
    %c0_16 = arith.constant 0 : index
    %c0_17 = arith.constant 0 : index
    %c0_18 = arith.constant 0 : index
    %c0_19 = arith.constant 0 : index
    %48 = vector.load %arg13[%c0_15, %c0_16, %c0_17, %c0_18, %c0_19] : memref<1x2x4x8x8xbf16, #tpu.memory_space<vmem>>, vector<1x2x1x8x8xbf16>
    %49 = vector.shape_cast %48 : vector<1x2x1x8x8xbf16> to vector<2x8x8xbf16>
    %50 = vector.shape_cast %47 : vector<2x8x8xbf16> to vector<1x2x1x8x8xbf16>
    tpu.vector_store %arg13[%c0_15, %c0_16, %c0_17, %c0_18, %c0_19], %50 {strides = array<i32>} : memref<1x2x4x8x8xbf16, #tpu.memory_space<vmem>>, vector<1x2x1x8x8xbf16>,
    %51 = arith.truncf %46 : vector<2x8x8xf32> to vector<2x8x8xbf16>
    "tpu.trace_start"() <{level = 10 : i32, message = "bqk,bkd->bqd"}> : () -> ()
    %cst_20 = arith.constant dense<0.000000e+00> : vector<2x8x8xf32>
    %52 = tpu.matmul %51, %34, %cst_20 {dimension_numbers = #tpu.dot_dimension_numbers<[2], [1], [1], [2], [0, 0, 0, 1, 1, 2], [0], [0]>} : vector<2x8x8xbf16>, vector<2x8x8xbf16>, vector<2x8x8xf32> -> vector<2x8x8xf32>
    "tpu.trace_stop"() : () -> ()
    %53 = vector.shape_cast %52 : vector<2x8x8xf32> to vector<16x8xf32>
    %54 = vector.extract_strided_slice %25 {offsets = [0, 8], sizes = [16, 8], strides = [1, 1]} : vector<16x96xf32> to vector<16x8xf32>
    %55 = vector.shape_cast %54 : vector<16x8xf32> to vector<2x8x8xf32>
    %56 = arith.truncf %55 : vector<2x8x8xf32> to vector<2x8x8xbf16>
    %57 = vector.extract_strided_slice %25 {offsets = [0, 40], sizes = [16, 8], strides = [1, 1]} : vector<16x96xf32> to vector<16x8xf32>
    %58 = vector.shape_cast %57 : vector<16x8xf32> to vector<2x8x8xf32>
    %59 = arith.truncf %58 : vector<2x8x8xf32> to vector<2x8x8xbf16>
    %60 = vector.extract_strided_slice %25 {offsets = [0, 72], sizes = [16, 8], strides = [1, 1]} : vector<16x96xf32> to vector<16x8xf32>
    %61 = vector.shape_cast %60 : vector<16x8xf32> to vector<2x8x8xf32>
    %62 = arith.truncf %61 : vector<2x8x8xf32> to vector<2x8x8xbf16>
    "tpu.trace_start"() <{level = 10 : i32, message = "bqd,bkd->bqk"}> : () -> ()
    %cst_21 = arith.constant dense<0.000000e+00> : vector<2x8x8xf32>
    %63 = tpu.matmul %56, %59, %cst_21 {dimension_numbers = #tpu.dot_dimension_numbers<[2], [2], [1], [1], [0, 0, 0, 1, 1, 1], [0], [0]>} : vector<2x8x8xbf16>, vector<2x8x8xbf16>, vector<2x8x8xf32> -> vector<2x8x8xf32>
    "tpu.trace_stop"() : () -> ()
    %cst_22 = arith.constant 0.353553385 : f32
    %64 = vector.broadcast %cst_22 : f32 to vector<2x8x8xf32>
    %65 = arith.mulf %63, %64 : vector<2x8x8xf32>
    %cst_23 = arith.constant dense<0xFF800000> : vector<2x8xf32>
    %66 = vector.multi_reduction <maximumf>, %65, %cst_23 [2] : vector<2x8x8xf32> to vector<2x8xf32>
    %67 = vector.shape_cast %66 : vector<2x8xf32> to vector<2x8x1xf32>
    %68 = vector.broadcast %67 : vector<2x8x1xf32> to vector<2x8x8xf32>
    %69 = arith.subf %65, %68 : vector<2x8x8xf32>
    %70 = math.exp %69 : vector<2x8x8xf32>
    %cst_24 = arith.constant dense<0.000000e+00> : vector<2x8xf32>
    %71 = vector.multi_reduction <add>, %70, %cst_24 [2] : vector<2x8x8xf32> to vector<2x8xf32>
    %72 = vector.shape_cast %71 : vector<2x8xf32> to vector<2x8x1xf32>
    %73 = vector.broadcast %72 : vector<2x8x1xf32> to vector<2x8x8xf32>
    %74 = arith.divf %70, %73 : vector<2x8x8xf32>
    %75 = arith.truncf %74 : vector<2x8x8xf32> to vector<2x8x8xbf16>
    %c0_25 = arith.constant 0 : index
    %c0_26 = arith.constant 0 : index
    %c1 = arith.constant 1 : index
    %c0_27 = arith.constant 0 : index
    %c0_28 = arith.constant 0 : index
    %76 = vector.load %arg13[%c0_25, %c0_26, %c1, %c0_27, %c0_28] : memref<1x2x4x8x8xbf16, #tpu.memory_space<vmem>>, vector<1x2x1x8x8xbf16>
    %77 = vector.shape_cast %76 : vector<1x2x1x8x8xbf16> to vector<2x8x8xbf16>
    %78 = vector.shape_cast %75 : vector<2x8x8xbf16> to vector<1x2x1x8x8xbf16>
    tpu.vector_store %arg13[%c0_25, %c0_26, %c1, %c0_27, %c0_28], %78 {strides = array<i32>} : memref<1x2x4x8x8xbf16, #tpu.memory_space<vmem>>, vector<1x2x1x8x8xbf16>,
    %79 = arith.truncf %74 : vector<2x8x8xf32> to vector<2x8x8xbf16>
    "tpu.trace_start"() <{level = 10 : i32, message = "bqk,bkd->bqd"}> : () -> ()
    %cst_29 = arith.constant dense<0.000000e+00> : vector<2x8x8xf32>
    %80 = tpu.matmul %79, %62, %cst_29 {dimension_numbers = #tpu.dot_dimension_numbers<[2], [1], [1], [2], [0, 0, 0, 1, 1, 2], [0], [0]>} : vector<2x8x8xbf16>, vector<2x8x8xbf16>, vector<2x8x8xf32> -> vector<2x8x8xf32>
    "tpu.trace_stop"() : () -> ()
    %81 = vector.shape_cast %80 : vector<2x8x8xf32> to vector<16x8xf32>
    %82 = vector.extract_strided_slice %25 {offsets = [0, 16], sizes = [16, 8], strides = [1, 1]} : vector<16x96xf32> to vector<16x8xf32>
    %83 = vector.shape_cast %82 : vector<16x8xf32> to vector<2x8x8xf32>
    %84 = arith.truncf %83 : vector<2x8x8xf32> to vector<2x8x8xbf16>
    %85 = vector.extract_strided_slice %25 {offsets = [0, 48], sizes = [16, 8], strides = [1, 1]} : vector<16x96xf32> to vector<16x8xf32>
    %86 = vector.shape_cast %85 : vector<16x8xf32> to vector<2x8x8xf32>
    %87 = arith.truncf %86 : vector<2x8x8xf32> to vector<2x8x8xbf16>
    %88 = vector.extract_strided_slice %25 {offsets = [0, 80], sizes = [16, 8], strides = [1, 1]} : vector<16x96xf32> to vector<16x8xf32>
    %89 = vector.shape_cast %88 : vector<16x8xf32> to vector<2x8x8xf32>
    %90 = arith.truncf %89 : vector<2x8x8xf32> to vector<2x8x8xbf16>
    "tpu.trace_start"() <{level = 10 : i32, message = "bqd,bkd->bqk"}> : () -> ()
    %cst_30 = arith.constant dense<0.000000e+00> : vector<2x8x8xf32>
    %91 = tpu.matmul %84, %87, %cst_30 {dimension_numbers = #tpu.dot_dimension_numbers<[2], [2], [1], [1], [0, 0, 0, 1, 1, 1], [0], [0]>} : vector<2x8x8xbf16>, vector<2x8x8xbf16>, vector<2x8x8xf32> -> vector<2x8x8xf32>
    "tpu.trace_stop"() : () -> ()
    %cst_31 = arith.constant 0.353553385 : f32
    %92 = vector.broadcast %cst_31 : f32 to vector<2x8x8xf32>
    %93 = arith.mulf %91, %92 : vector<2x8x8xf32>
    %cst_32 = arith.constant dense<0xFF800000> : vector<2x8xf32>
    %94 = vector.multi_reduction <maximumf>, %93, %cst_32 [2] : vector<2x8x8xf32> to vector<2x8xf32>
    %95 = vector.shape_cast %94 : vector<2x8xf32> to vector<2x8x1xf32>
    %96 = vector.broadcast %95 : vector<2x8x1xf32> to vector<2x8x8xf32>
    %97 = arith.subf %93, %96 : vector<2x8x8xf32>
    %98 = math.exp %97 : vector<2x8x8xf32>
    %cst_33 = arith.constant dense<0.000000e+00> : vector<2x8xf32>
    %99 = vector.multi_reduction <add>, %98, %cst_33 [2] : vector<2x8x8xf32> to vector<2x8xf32>
    %100 = vector.shape_cast %99 : vector<2x8xf32> to vector<2x8x1xf32>
    %101 = vector.broadcast %100 : vector<2x8x1xf32> to vector<2x8x8xf32>
    %102 = arith.divf %98, %101 : vector<2x8x8xf32>
    %103 = arith.truncf %102 : vector<2x8x8xf32> to vector<2x8x8xbf16>
    %c0_34 = arith.constant 0 : index
    %c0_35 = arith.constant 0 : index
    %c2 = arith.constant 2 : index
    %c0_36 = arith.constant 0 : index
    %c0_37 = arith.constant 0 : index
    %104 = vector.load %arg13[%c0_34, %c0_35, %c2, %c0_36, %c0_37] : memref<1x2x4x8x8xbf16, #tpu.memory_space<vmem>>, vector<1x2x1x8x8xbf16>
    %105 = vector.shape_cast %104 : vector<1x2x1x8x8xbf16> to vector<2x8x8xbf16>
    %106 = vector.shape_cast %103 : vector<2x8x8xbf16> to vector<1x2x1x8x8xbf16>
    tpu.vector_store %arg13[%c0_34, %c0_35, %c2, %c0_36, %c0_37], %106 {strides = array<i32>} : memref<1x2x4x8x8xbf16, #tpu.memory_space<vmem>>, vector<1x2x1x8x8xbf16>,
    %107 = arith.truncf %102 : vector<2x8x8xf32> to vector<2x8x8xbf16>
    "tpu.trace_start"() <{level = 10 : i32, message = "bqk,bkd->bqd"}> : () -> ()
    %cst_38 = arith.constant dense<0.000000e+00> : vector<2x8x8xf32>
    %108 = tpu.matmul %107, %90, %cst_38 {dimension_numbers = #tpu.dot_dimension_numbers<[2], [1], [1], [2], [0, 0, 0, 1, 1, 2], [0], [0]>} : vector<2x8x8xbf16>, vector<2x8x8xbf16>, vector<2x8x8xf32> -> vector<2x8x8xf32>
    "tpu.trace_stop"() : () -> ()
    %109 = vector.shape_cast %108 : vector<2x8x8xf32> to vector<16x8xf32>
    %110 = vector.extract_strided_slice %25 {offsets = [0, 24], sizes = [16, 8], strides = [1, 1]} : vector<16x96xf32> to vector<16x8xf32>
    %111 = vector.shape_cast %110 : vector<16x8xf32> to vector<2x8x8xf32>
    %112 = arith.truncf %111 : vector<2x8x8xf32> to vector<2x8x8xbf16>
    %113 = vector.extract_strided_slice %25 {offsets = [0, 56], sizes = [16, 8], strides = [1, 1]} : vector<16x96xf32> to vector<16x8xf32>
    %114 = vector.shape_cast %113 : vector<16x8xf32> to vector<2x8x8xf32>
    %115 = arith.truncf %114 : vector<2x8x8xf32> to vector<2x8x8xbf16>
    %116 = vector.extract_strided_slice %25 {offsets = [0, 88], sizes = [16, 8], strides = [1, 1]} : vector<16x96xf32> to vector<16x8xf32>
    %117 = vector.shape_cast %116 : vector<16x8xf32> to vector<2x8x8xf32>
    %118 = arith.truncf %117 : vector<2x8x8xf32> to vector<2x8x8xbf16>
    "tpu.trace_start"() <{level = 10 : i32, message = "bqd,bkd->bqk"}> : () -> ()
    %cst_39 = arith.constant dense<0.000000e+00> : vector<2x8x8xf32>
    %119 = tpu.matmul %112, %115, %cst_39 {dimension_numbers = #tpu.dot_dimension_numbers<[2], [2], [1], [1], [0, 0, 0, 1, 1, 1], [0], [0]>} : vector<2x8x8xbf16>, vector<2x8x8xbf16>, vector<2x8x8xf32> -> vector<2x8x8xf32>
    "tpu.trace_stop"() : () -> ()
    %cst_40 = arith.constant 0.353553385 : f32
    %120 = vector.broadcast %cst_40 : f32 to vector<2x8x8xf32>
    %121 = arith.mulf %119, %120 : vector<2x8x8xf32>
    %cst_41 = arith.constant dense<0xFF800000> : vector<2x8xf32>
    %122 = vector.multi_reduction <maximumf>, %121, %cst_41 [2] : vector<2x8x8xf32> to vector<2x8xf32>
    %123 = vector.shape_cast %122 : vector<2x8xf32> to vector<2x8x1xf32>
    %124 = vector.broadcast %123 : vector<2x8x1xf32> to vector<2x8x8xf32>
    %125 = arith.subf %121, %124 : vector<2x8x8xf32>
    %126 = math.exp %125 : vector<2x8x8xf32>
    %cst_42 = arith.constant dense<0.000000e+00> : vector<2x8xf32>
    %127 = vector.multi_reduction <add>, %126, %cst_42 [2] : vector<2x8x8xf32> to vector<2x8xf32>
    %128 = vector.shape_cast %127 : vector<2x8xf32> to vector<2x8x1xf32>
    %129 = vector.broadcast %128 : vector<2x8x1xf32> to vector<2x8x8xf32>
    %130 = arith.divf %126, %129 : vector<2x8x8xf32>
    %131 = arith.truncf %130 : vector<2x8x8xf32> to vector<2x8x8xbf16>
    %c0_43 = arith.constant 0 : index
    %c0_44 = arith.constant 0 : index
    %c3 = arith.constant 3 : index
    %c0_45 = arith.constant 0 : index
    %c0_46 = arith.constant 0 : index
    %132 = vector.load %arg13[%c0_43, %c0_44, %c3, %c0_45, %c0_46] : memref<1x2x4x8x8xbf16, #tpu.memory_space<vmem>>, vector<1x2x1x8x8xbf16>
    %133 = vector.shape_cast %132 : vector<1x2x1x8x8xbf16> to vector<2x8x8xbf16>
    %134 = vector.shape_cast %131 : vector<2x8x8xbf16> to vector<1x2x1x8x8xbf16>
    tpu.vector_store %arg13[%c0_43, %c0_44, %c3, %c0_45, %c0_46], %134 {strides = array<i32>} : memref<1x2x4x8x8xbf16, #tpu.memory_space<vmem>>, vector<1x2x1x8x8xbf16>,
    %135 = arith.truncf %130 : vector<2x8x8xf32> to vector<2x8x8xbf16>
    "tpu.trace_start"() <{level = 10 : i32, message = "bqk,bkd->bqd"}> : () -> ()
    %cst_47 = arith.constant dense<0.000000e+00> : vector<2x8x8xf32>
    %136 = tpu.matmul %135, %118, %cst_47 {dimension_numbers = #tpu.dot_dimension_numbers<[2], [1], [1], [2], [0, 0, 0, 1, 1, 2], [0], [0]>} : vector<2x8x8xbf16>, vector<2x8x8xbf16>, vector<2x8x8xf32> -> vector<2x8x8xf32>
    "tpu.trace_stop"() : () -> ()
    %137 = vector.shape_cast %136 : vector<2x8x8xf32> to vector<16x8xf32>
    %138 = tpu.concatenate %53, %81, %109, %137 in 1 : vector<16x8xf32>, vector<16x8xf32>, vector<16x8xf32>, vector<16x8xf32> -> vector<16x32xf32>
    %139 = arith.truncf %138 : vector<16x32xf32> to vector<16x32xbf16>
    %c0_48 = arith.constant 0 : index
    %c0_49 = arith.constant 0 : index
    %c0_50 = arith.constant 0 : index
    %140 = vector.load %arg6[%c0_48, %c0_49, %c0_50] : memref<1x32x32xbf16, #tpu.memory_space<vmem>>, vector<1x32x32xbf16>
    %141 = vector.shape_cast %140 : vector<1x32x32xbf16> to vector<32x32xbf16>
    %cst_51 = arith.constant dense<0.000000e+00> : vector<16x32xf32>
    %142 = tpu.matmul %139, %141, %cst_51 {dimension_numbers = #tpu.dot_dimension_numbers<[1], [0], [0], [1], [0, 0, 1, 1], [], []>} : vector<16x32xbf16>, vector<32x32xbf16>, vector<16x32xf32> -> vector<16x32xf32>
    %c0_52 = arith.constant 0 : index
    %c0_53 = arith.constant 0 : index
    %c0_54 = arith.constant 0 : index
    %143 = vector.load %arg7[%c0_52, %c0_53, %c0_54] : memref<1x1x32xf32, #tpu.memory_space<vmem>>, vector<1x1x32xf32>
    %144 = vector.shape_cast %143 : vector<1x1x32xf32> to vector<1x32xf32>
    %145 = vector.broadcast %144 : vector<1x32xf32> to vector<16x32xf32>
    %146 = arith.addf %142, %145 : vector<16x32xf32>
    %147 = arith.addf %17, %146 : vector<16x32xf32>
    %c2_i32_55 = arith.constant 2 : i32
    %148 = arith.muli %c2_i32_55, %arg1 : i32
    %c1_i32 = arith.constant 1 : i32
    %149 = arith.addi %148, %c1_i32 : i32
    %150 = arith.index_cast %149 : i32 to index
    %151 = memref.load %arg2[%150] : memref<4xf32, #tpu.memory_space<smem>>
    %152 = arith.mulf %147, %147 : vector<16x32xf32>
    %cst_56 = arith.constant dense<0.000000e+00> : vector<16xf32>
    %153 = vector.multi_reduction <add>, %152, %cst_56 [1] : vector<16x32xf32> to vector<16xf32>
    %154 = vector.shape_cast %153 : vector<16xf32> to vector<16x1xf32>
    %155 = math.sqrt %154 : vector<16x1xf32>
    %cst_57 = arith.constant 9.99999974E-6 : f32
    %156 = vector.broadcast %cst_57 : f32 to vector<16x1xf32>
    %157 = arith.maximumf %155, %156 : vector<16x1xf32>
    %158 = vector.broadcast %151 : f32 to vector<16x1xf32>
    %159 = arith.divf %158, %157 : vector<16x1xf32>
    %160 = vector.broadcast %159 : vector<16x1xf32> to vector<16x32xf32>
    %161 = arith.mulf %147, %160 : vector<16x32xf32>
    %162 = arith.truncf %161 : vector<16x32xf32> to vector<16x32xbf16>
    %c0_58 = arith.constant 0 : index
    %c0_59 = arith.constant 0 : index
    %c0_60 = arith.constant 0 : index
    %163 = vector.load %arg8[%c0_58, %c0_59, %c0_60] : memref<1x32x64xbf16, #tpu.memory_space<vmem>>, vector<1x32x64xbf16>
    %164 = vector.shape_cast %163 : vector<1x32x64xbf16> to vector<32x64xbf16>
    %cst_61 = arith.constant dense<0.000000e+00> : vector<16x64xf32>
    %165 = tpu.matmul %162, %164, %cst_61 {dimension_numbers = #tpu.dot_dimension_numbers<[1], [0], [0], [1], [0, 0, 1, 1], [], []>} : vector<16x32xbf16>, vector<32x64xbf16>, vector<16x64xf32> -> vector<16x64xf32>
    %c0_62 = arith.constant 0 : index
    %c0_63 = arith.constant 0 : index
    %c0_64 = arith.constant 0 : index
    %166 = vector.load %arg9[%c0_62, %c0_63, %c0_64] : memref<1x1x64xf32, #tpu.memory_space<vmem>>, vector<1x1x64xf32>
    %167 = vector.shape_cast %166 : vector<1x1x64xf32> to vector<1x64xf32>
    %168 = vector.broadcast %167 : vector<1x64xf32> to vector<16x64xf32>
    %169 = arith.addf %165, %168 : vector<16x64xf32>
    %cst_65 = arith.constant 0.000000e+00 : f32
    %170 = vector.broadcast %cst_65 : f32 to vector<16x64xf32>
    %171 = arith.maximumf %169, %170 : vector<16x64xf32>
    %172 = arith.truncf %171 : vector<16x64xf32> to vector<16x64xbf16>
    %c0_66 = arith.constant 0 : index
    %c0_67 = arith.constant 0 : index
    %c0_68 = arith.constant 0 : index
    %173 = vector.load %arg10[%c0_66, %c0_67, %c0_68] : memref<1x64x32xbf16, #tpu.memory_space<vmem>>, vector<1x64x32xbf16>
    %174 = vector.shape_cast %173 : vector<1x64x32xbf16> to vector<64x32xbf16>
    %cst_69 = arith.constant dense<0.000000e+00> : vector<16x32xf32>
    %175 = tpu.matmul %172, %174, %cst_69 {dimension_numbers = #tpu.dot_dimension_numbers<[1], [0], [0], [1], [0, 0, 1, 1], [], []>} : vector<16x64xbf16>, vector<64x32xbf16>, vector<16x32xf32> -> vector<16x32xf32>
    %c0_70 = arith.constant 0 : index
    %c0_71 = arith.constant 0 : index
    %c0_72 = arith.constant 0 : index
    %176 = vector.load %arg11[%c0_70, %c0_71, %c0_72] : memref<1x1x32xf32, #tpu.memory_space<vmem>>, vector<1x1x32xf32>
    %177 = vector.shape_cast %176 : vector<1x1x32xf32> to vector<1x32xf32>
    %178 = vector.broadcast %177 : vector<1x32xf32> to vector<16x32xf32>
    %179 = arith.addf %175, %178 : vector<16x32xf32>
    %180 = arith.addf %161, %179 : vector<16x32xf32>
    %c1_i32_73 = arith.constant 1 : i32
    %181 = arith.cmpi slt, %arg1, %c1_i32_73 : i32
    %182 = arith.extui %181 : i1 to i32
    %c0_i32_74 = arith.constant 0 : i32
    %183 = arith.cmpi ne, %182, %c0_i32_74 : i32
    scf.if %183 {
      %187 = vector.shape_cast %180 : vector<16x32xf32> to vector<2x8x32xf32>
      %c0_77 = arith.constant 0 : index
      %c0_78 = arith.constant 0 : index
      %c0_79 = arith.constant 0 : index
      %188 = vector.load %arg12[%c0_77, %c0_78, %c0_79] : memref<2x8x32xf32, #tpu.memory_space<vmem>>, vector<2x8x32xf32>
      tpu.vector_store %arg12[%c0_77, %c0_78, %c0_79], %187 {strides = array<i32>} : memref<2x8x32xf32, #tpu.memory_space<vmem>>, vector<2x8x32xf32>,
    } else {
    }
    %c1_i32_75 = arith.constant 1 : i32
    %184 = arith.cmpi eq, %arg1, %c1_i32_75 : i32
    %185 = arith.extui %184 : i1 to i32
    %c0_i32_76 = arith.constant 0 : i32
    %186 = arith.cmpi ne, %185, %c0_i32_76 : i32
    scf.if %186 {
      %187 = arith.mulf %180, %180 : vector<16x32xf32>
      %cst_77 = arith.constant dense<0.000000e+00> : vector<16xf32>
      %188 = vector.multi_reduction <add>, %187, %cst_77 [1] : vector<16x32xf32> to vector<16xf32>
      %189 = vector.shape_cast %188 : vector<16xf32> to vector<16x1xf32>
      %190 = math.sqrt %189 : vector<16x1xf32>
      %cst_78 = arith.constant 9.99999974E-6 : f32
      %191 = vector.broadcast %cst_78 : f32 to vector<16x1xf32>
      %192 = arith.maximumf %190, %191 : vector<16x1xf32>
      %cst_79 = arith.constant 5.65685415 : f32
      %193 = vector.broadcast %cst_79 : f32 to vector<16x1xf32>
      %194 = arith.divf %193, %192 : vector<16x1xf32>
      %195 = vector.broadcast %194 : vector<16x1xf32> to vector<16x32xf32>
      %196 = arith.mulf %180, %195 : vector<16x32xf32>
      %197 = vector.shape_cast %196 : vector<16x32xf32> to vector<2x8x32xf32>
      %c0_80 = arith.constant 0 : index
      %c0_81 = arith.constant 0 : index
      %c0_82 = arith.constant 0 : index
      %198 = vector.load %arg12[%c0_80, %c0_81, %c0_82] : memref<2x8x32xf32, #tpu.memory_space<vmem>>, vector<2x8x32xf32>
      tpu.vector_store %arg12[%c0_80, %c0_81, %c0_82], %197 {strides = array<i32>} : memref<2x8x32xf32, #tpu.memory_space<vmem>>, vector<2x8x32xf32>,
    } else {
    }
    return
  }
  func.func @transform_0(%arg0: i32, %arg1: i32, %arg2: memref<4xf32, #tpu.memory_space<smem>>) -> (i32, i32, i32) {
    %c0_i32 = arith.constant 0 : i32
    %c0_i32_0 = arith.constant 0 : i32
    %c0_i32_1 = arith.constant 0 : i32
    return %arg0, %c0_i32, %c0_i32_0 : i32, i32, i32
  }
  func.func @transform_1(%arg0: i32, %arg1: i32, %arg2: memref<4xf32, #tpu.memory_space<smem>>) -> (i32, i32, i32) {
    %c0_i32 = arith.constant 0 : i32
    %c0_i32_0 = arith.constant 0 : i32
    %c0_i32_1 = arith.constant 0 : i32
    return %arg1, %c0_i32, %c0_i32_0 : i32, i32, i32
  }
  func.func @transform_2(%arg0: i32, %arg1: i32, %arg2: memref<4xf32, #tpu.memory_space<smem>>) -> (i32, i32, i32) {
    %c0_i32 = arith.constant 0 : i32
    %c0_i32_0 = arith.constant 0 : i32
    %c0_i32_1 = arith.constant 0 : i32
    return %arg1, %c0_i32, %c0_i32_0 : i32, i32, i32
  }
  func.func @transform_3(%arg0: i32, %arg1: i32, %arg2: memref<4xf32, #tpu.memory_space<smem>>) -> (i32, i32, i32) {
    %c0_i32 = arith.constant 0 : i32
    %c0_i32_0 = arith.constant 0 : i32
    %c0_i32_1 = arith.constant 0 : i32
    return %arg1, %c0_i32, %c0_i32_0 : i32, i32, i32
  }
  func.func @transform_4(%arg0: i32, %arg1: i32, %arg2: memref<4xf32, #tpu.memory_space<smem>>) -> (i32, i32, i32) {
    %c0_i32 = arith.constant 0 : i32
    %c0_i32_0 = arith.constant 0 : i32
    %c0_i32_1 = arith.constant 0 : i32
    return %arg1, %c0_i32, %c0_i32_0 : i32, i32, i32
  }
  func.func @transform_5(%arg0: i32, %arg1: i32, %arg2: memref<4xf32, #tpu.memory_space<smem>>) -> (i32, i32, i32) {
    %c0_i32 = arith.constant 0 : i32
    %c0_i32_0 = arith.constant 0 : i32
    %c0_i32_1 = arith.constant 0 : i32
    return %arg1, %c0_i32, %c0_i32_0 : i32, i32, i32
  }
  func.func @transform_6(%arg0: i32, %arg1: i32, %arg2: memref<4xf32, #tpu.memory_space<smem>>) -> (i32, i32, i32) {
    %c0_i32 = arith.constant 0 : i32
    %c0_i32_0 = arith.constant 0 : i32
    %c0_i32_1 = arith.constant 0 : i32
    return %arg1, %c0_i32, %c0_i32_0 : i32, i32, i32
  }
  func.func @transform_7(%arg0: i32, %arg1: i32, %arg2: memref<4xf32, #tpu.memory_space<smem>>) -> (i32, i32, i32) {
    %c0_i32 = arith.constant 0 : i32
    %c0_i32_0 = arith.constant 0 : i32
    %c0_i32_1 = arith.constant 0 : i32
    return %arg1, %c0_i32, %c0_i32_0 : i32, i32, i32
  }
  func.func @transform_8(%arg0: i32, %arg1: i32, %arg2: memref<4xf32, #tpu.memory_space<smem>>) -> (i32, i32, i32) {
    %c0_i32 = arith.constant 0 : i32
    %c0_i32_0 = arith.constant 0 : i32
    %c0_i32_1 = arith.constant 0 : i32
    return %arg1, %c0_i32, %c0_i32_0 : i32, i32, i32
  }
  func.func @transform_9(%arg0: i32, %arg1: i32, %arg2: memref<4xf32, #tpu.memory_space<smem>>) -> (i32, i32, i32) {
    %c0_i32 = arith.constant 0 : i32
    %c0_i32_0 = arith.constant 0 : i32
    %c0_i32_1 = arith.constant 0 : i32
    return %arg0, %c0_i32, %c0_i32_0 : i32, i32, i32
  }
  func.func @transform_10(%arg0: i32, %arg1: i32, %arg2: memref<4xf32, #tpu.memory_space<smem>>) -> (i32, i32, i32, i32, i32) {
    %c0_i32 = arith.constant 0 : i32
    %c0_i32_0 = arith.constant 0 : i32
    %c0_i32_1 = arith.constant 0 : i32
    %c0_i32_2 = arith.constant 0 : i32
    return %arg1, %arg0, %c0_i32, %c0_i32_0, %c0_i32_1 : i32, i32, i32, i32, i32
  }
}

</mosaic_0001>

<llo_original>
// kernel: tpu_custom_call.1
$region0: #{tpu_custom_call.1}
  #allocation0 [shape = 'u32[]', space=smem, size = 0x4, offset = 0x4, fixed_abs, tag = 'smem constant byte address 0x4 - core index']
  #allocation1 [shape = 'u32[144,128]{1,0:T(1,128)}', space=vmem, size = 0x12000, scoped, tag = 'internal scratch']
  #allocation2 [shape = 's32[1]{0}', space=sflag, size = 0x4, scoped, tag = 'scoped memory for tpu_custom_call.1']
  #allocation3 [shape = 'u8[512]{0}', space=smem, size = 0x200, scoped, tag = 'prefetched SMEM operand 0']
  %s0 = inlined_call_operand.hbm [shape: f32[4], index: 0, kind: input, shape index: {}]
  %s1 = inlined_call_operand.hbm [shape: f32[2,8,32], index: 1, kind: input, shape index: {}]
  %s2 = inlined_call_operand.vmem [shape: bf16[2,32,96], index: 2, kind: input, shape index: {}]
  %s3 = inlined_call_operand.vmem [shape: f32[2,1,96], index: 3, kind: input, shape index: {}]
  %s4 = inlined_call_operand.vmem [shape: bf16[2,32,32], index: 4, kind: input, shape index: {}]
  %s5 = inlined_call_operand.vmem [shape: f32[2,1,32], index: 5, kind: input, shape index: {}]
  %s6 = inlined_call_operand.vmem [shape: bf16[2,32,64], index: 6, kind: input, shape index: {}]
  %s7 = inlined_call_operand.vmem [shape: f32[2,1,64], index: 7, kind: input, shape index: {}]
  %s8 = inlined_call_operand.vmem [shape: bf16[2,64,32], index: 8, kind: input, shape index: {}]
  %s9 = inlined_call_operand.vmem [shape: f32[2,1,32], index: 9, kind: input, shape index: {}]
  %s10 = inlined_call_operand.hbm [shape: f32[2,8,32], index: 10, kind: output, shape index: {0}]
  %s11 = inlined_call_operand.hbm [shape: bf16[2,2,4,8,8], index: 11, kind: output, shape index: {1}]
  %12 = xla_tuple %s10, %s11
  %s13 = sld [smem:[#allocation0]]
  $region93: #{tpu_custom_call.1} parent=0
    _
  %s15 = ssub.s32 1, %s13
  %s16 = scalar_select 0, %s15, %s13
  %18 = dma.hbm_to_smem %s0, 16, [#allocation3], [#allocation2]
  %19 = dma.done [#allocation2], 16
  %20 = sfence
  $region1: #{tpu_custom_call.1} parent=0
    #allocation4 [shape = 'u8[8192]{0}', space=vmem, size = 0x2000, scoped, tag = 'input window, operand 1, single buffered']
    #allocation5 [shape = 's32[2]{0}', space=sflag, size = 0x8, scoped, tag = 'scoped memory for tpu_custom_call.1']
    #allocation6 [shape = 's32[2]{0}', space=sflag, size = 0x8, scoped, tag = 'scoped memory for tpu_custom_call.1']
    #allocation7 [shape = 'u8[8192]{0}', space=vmem, size = 0x2000, scoped, tag = 'output window, operand 0, single buffered']
    #allocation8 [shape = 'u8[32768]{0}', space=vmem, size = 0x8000, scoped, tag = 'output window, operand 1']
    #allocation9 [shape = 's32[2]{0}', space=sflag, size = 0x8, scoped, tag = 'scoped memory for tpu_custom_call.1']
    %21 = vsyncpa [#allocation5], 0
    %22 = vsyncpa [#allocation6], 0
    %23 = vsyncpa [#allocation9], 0
    %s24 = scalar_lea.sflag [#allocation9], 1
    %25 = vsyncpa %s24, 0
    loop: start=0, step=1, limit=4
    $region2: #{tpu_custom_call.1} parent=1 // loop_pre_header
      _
    $region3: #{tpu_custom_call.1} parent=1 // loop_header
      %s27 = sphi 0, %s31
      %p28 = scmp.ge.s32.totalorder %s27, 4
      %s34 = sphi 0, %s46
      %s35 = sphi 0, %s42
      %s36 = sphi 0, %s34
      %s37 = sphi 0, %s35
      %s38 = sphi 0, %s36
      %s39 = sphi 0, %s37
      %s49 = sphi 0, %s51
      %s52 = sphi 0, %s49
      %s53 = sphi 0, %s52
      %s69 = sphi 0, %s53
      %s75 = sphi 0, %s77
      %s78 = sphi 0, %s75
      %s79 = sphi 0, %s78
      %s95 = sphi 0, %s79
      %s101 = sphi 0, %s103
      %s104 = sphi 0, %s101
      %s105 = sphi 0, %s104
      %s121 = sphi 0, %s105
      %s127 = sphi 0, %s129
      %s130 = sphi 0, %s127
      %s131 = sphi 0, %s130
      %s147 = sphi 0, %s131
      %s153 = sphi 0, %s155
      %s156 = sphi 0, %s153
      %s157 = sphi 0, %s156
      %s173 = sphi 0, %s157
      %s179 = sphi 0, %s181
      %s182 = sphi 0, %s179
      %s183 = sphi 0, %s182
      %s199 = sphi 0, %s183
      %s205 = sphi 0, %s207
      %s208 = sphi 0, %s205
      %s209 = sphi 0, %s208
      %s225 = sphi 0, %s209
      %s231 = sphi 0, %s233
      %s234 = sphi 0, %s231
      %s235 = sphi 0, %s234
      %s251 = sphi 0, %s235
      %s257 = sphi 0, %s259
      %s260 = sphi 0, %s257
      %s261 = sphi 0, %s260
      %s277 = sphi 0, %s261
      %s283 = sphi 0, %s285
      %s286 = sphi 0, %s283
      %s287 = sphi 0, %s286
      %s303 = sphi 0, %s287
      %s311 = sphi 0, %s313
      %s314 = sphi 0, %s311
      %s315 = sphi 0, %s314
      %s331 = sphi 0, %s315
    $region4: #{tpu_custom_call.1} parent=1 // loop_header_branch
      %30 = sbr.rel (%p28) target = $region8
    $region5: #{tpu_custom_call.1} parent=1 // loop_body
      %s32 = ssub.s32 %s27, 1
      %s33 = ssub.s32 %s27, 2
      %s40 = sadd.s32 1, %s35
      %p41 = scmp.ge.s32.totalorder %s40, 2
      %s42 = scalar_select %p41, 0, %s40
      %s43 = sadd.s32 1, %s34
      %s44 = scalar_select %p41, %s43, %s34
      %p45 = scmp.ge.s32.totalorder %s44, 1
      %s46 = scalar_select %p45, 0, %s44
      %s47 = ssub.s32 %s34, %s46
      %p48 = scmp.eq.s32.totalorder %s47, 0
      %s50 = sadd.s32 %s49, 1
      %s51 = scalar_select %p48, %s49, %s50
      %p54 = pneg %p48
      %p55 = scmp.eq.s32.totalorder %s27, 1
      %p56 = por %p54, %p55
      %p57 = scmp.ne.s32.totalorder %s49, %s52
      %p58 = scmp.eq.s32.totalorder %s27, 0
      %p59 = por %p57, %p58
      %p60 = scmp.ne.s32.totalorder %s49, %s52
      %p61 = scmp.eq.s32.totalorder %s32, 1
      %p62 = por %p60, %p61
      %p63 = scmp.ne.s32.totalorder %s52, %s53
      %p64 = scmp.eq.s32.totalorder %s32, 0
      %p65 = por %p63, %p64
      %p66 = scmp.ne.s32.totalorder %s52, %s53
      %p67 = scmp.eq.s32.totalorder %s33, 1
      %p68 = por %p66, %p67
      %p70 = scmp.ne.s32.totalorder %s53, %s69
      %p71 = scmp.eq.s32.totalorder %s33, 0
      %p72 = por %p70, %p71
      %s73 = ssub.s32 %s35, %s42
      %p74 = scmp.eq.s32.totalorder %s73, 0
      %s76 = sadd.s32 %s75, 1
      %s77 = scalar_select %p74, %s75, %s76
      %p80 = pneg %p74
      %p81 = scmp.eq.s32.totalorder %s27, 1
      %p82 = por %p80, %p81
      %p83 = scmp.ne.s32.totalorder %s75, %s78
      %p84 = scmp.eq.s32.totalorder %s27, 0
      %p85 = por %p83, %p84
      %p86 = scmp.ne.s32.totalorder %s75, %s78
      %p87 = scmp.eq.s32.totalorder %s32, 1
      %p88 = por %p86, %p87
      %p89 = scmp.ne.s32.totalorder %s78, %s79
      %p90 = scmp.eq.s32.totalorder %s32, 0
      %p91 = por %p89, %p90
      %p92 = scmp.ne.s32.totalorder %s78, %s79
      %p93 = scmp.eq.s32.totalorder %s33, 1
      %p94 = por %p92, %p93
      %p96 = scmp.ne.s32.totalorder %s79, %s95
      %p97 = scmp.eq.s32.totalorder %s33, 0
      %p98 = por %p96, %p97
      %s99 = ssub.s32 %s35, %s42
      %p100 = scmp.eq.s32.totalorder %s99, 0
      %s102 = sadd.s32 %s101, 1
      %s103 = scalar_select %p100, %s101, %s102
      %p106 = pneg %p100
      %p107 = scmp.eq.s32.totalorder %s27, 1
      %p108 = por %p106, %p107
      %p109 = scmp.ne.s32.totalorder %s101, %s104
      %p110 = scmp.eq.s32.totalorder %s27, 0
      %p111 = por %p109, %p110
      %p112 = scmp.ne.s32.totalorder %s101, %s104
      %p113 = scmp.eq.s32.totalorder %s32, 1
      %p114 = por %p112, %p113
      %p115 = scmp.ne.s32.totalorder %s104, %s105
      %p116 = scmp.eq.s32.totalorder %s32, 0
      %p117 = por %p115, %p116
      %p118 = scmp.ne.s32.totalorder %s104, %s105
      %p119 = scmp.eq.s32.totalorder %s33, 1
      %p120 = por %p118, %p119
      %p122 = scmp.ne.s32.totalorder %s105, %s121
      %p123 = scmp.eq.s32.totalorder %s33, 0
      %p124 = por %p122, %p123
      %s125 = ssub.s32 %s35, %s42
      %p126 = scmp.eq.s32.totalorder %s125, 0
      %s128 = sadd.s32 %s127, 1
      %s129 = scalar_select %p126, %s127, %s128
      %p132 = pneg %p126
      %p133 = scmp.eq.s32.totalorder %s27, 1
      %p134 = por %p132, %p133
      %p135 = scmp.ne.s32.totalorder %s127, %s130
      %p136 = scmp.eq.s32.totalorder %s27, 0
      %p137 = por %p135, %p136
      %p138 = scmp.ne.s32.totalorder %s127, %s130
      %p139 = scmp.eq.s32.totalorder %s32, 1
      %p140 = por %p138, %p139
      %p141 = scmp.ne.s32.totalorder %s130, %s131
      %p142 = scmp.eq.s32.totalorder %s32, 0
      %p143 = por %p141, %p142
      %p144 = scmp.ne.s32.totalorder %s130, %s131
      %p145 = scmp.eq.s32.totalorder %s33, 1
      %p146 = por %p144, %p145
      %p148 = scmp.ne.s32.totalorder %s131, %s147
      %p149 = scmp.eq.s32.totalorder %s33, 0
      %p150 = por %p148, %p149
      %s151 = ssub.s32 %s35, %s42
      %p152 = scmp.eq.s32.totalorder %s151, 0
      %s154 = sadd.s32 %s153, 1
      %s155 = scalar_select %p152, %s153, %s154
      %p158 = pneg %p152
      %p159 = scmp.eq.s32.totalorder %s27, 1
      %p160 = por %p158, %p159
      %p161 = scmp.ne.s32.totalorder %s153, %s156
      %p162 = scmp.eq.s32.totalorder %s27, 0
      %p163 = por %p161, %p162
      %p164 = scmp.ne.s32.totalorder %s153, %s156
      %p165 = scmp.eq.s32.totalorder %s32, 1
      %p166 = por %p164, %p165
      %p167 = scmp.ne.s32.totalorder %s156, %s157
      %p168 = scmp.eq.s32.totalorder %s32, 0
      %p169 = por %p167, %p168
      %p170 = scmp.ne.s32.totalorder %s156, %s157
      %p171 = scmp.eq.s32.totalorder %s33, 1
      %p172 = por %p170, %p171
      %p174 = scmp.ne.s32.totalorder %s157, %s173
      %p175 = scmp.eq.s32.totalorder %s33, 0
      %p176 = por %p174, %p175
      %s177 = ssub.s32 %s35, %s42
      %p178 = scmp.eq.s32.totalorder %s177, 0
      %s180 = sadd.s32 %s179, 1
      %s181 = scalar_select %p178, %s179, %s180
      %p184 = pneg %p178
      %p185 = scmp.eq.s32.totalorder %s27, 1
      %p186 = por %p184, %p185
      %p187 = scmp.ne.s32.totalorder %s179, %s182
      %p188 = scmp.eq.s32.totalorder %s27, 0
      %p189 = por %p187, %p188
      %p190 = scmp.ne.s32.totalorder %s179, %s182
      %p191 = scmp.eq.s32.totalorder %s32, 1
      %p192 = por %p190, %p191
      %p193 = scmp.ne.s32.totalorder %s182, %s183
      %p194 = scmp.eq.s32.totalorder %s32, 0
      %p195 = por %p193, %p194
      %p196 = scmp.ne.s32.totalorder %s182, %s183
      %p197 = scmp.eq.s32.totalorder %s33, 1
      %p198 = por %p196, %p197
      %p200 = scmp.ne.s32.totalorder %s183, %s199
      %p201 = scmp.eq.s32.totalorder %s33, 0
      %p202 = por %p200, %p201
      %s203 = ssub.s32 %s35, %s42
      %p204 = scmp.eq.s32.totalorder %s203, 0
      %s206 = sadd.s32 %s205, 1
      %s207 = scalar_select %p204, %s205, %s206
      %p210 = pneg %p204
      %p211 = scmp.eq.s32.totalorder %s27, 1
      %p212 = por %p210, %p211
      %p213 = scmp.ne.s32.totalorder %s205, %s208
      %p214 = scmp.eq.s32.totalorder %s27, 0
      %p215 = por %p213, %p214
      %p216 = scmp.ne.s32.totalorder %s205, %s208
      %p217 = scmp.eq.s32.totalorder %s32, 1
      %p218 = por %p216, %p217
      %p219 = scmp.ne.s32.totalorder %s208, %s209
      %p220 = scmp.eq.s32.totalorder %s32, 0
      %p221 = por %p219, %p220
      %p222 = scmp.ne.s32.totalorder %s208, %s209
      %p223 = scmp.eq.s32.totalorder %s33, 1
      %p224 = por %p222, %p223
      %p226 = scmp.ne.s32.totalorder %s209, %s225
      %p227 = scmp.eq.s32.totalorder %s33, 0
      %p228 = por %p226, %p227
      %s229 = ssub.s32 %s35, %s42
      %p230 = scmp.eq.s32.totalorder %s229, 0
      %s232 = sadd.s32 %s231, 1
      %s233 = scalar_select %p230, %s231, %s232
      %p236 = pneg %p230
      %p237 = scmp.eq.s32.totalorder %s27, 1
      %p238 = por %p236, %p237
      %p239 = scmp.ne.s32.totalorder %s231, %s234
      %p240 = scmp.eq.s32.totalorder %s27, 0
      %p241 = por %p239, %p240
      %p242 = scmp.ne.s32.totalorder %s231, %s234
      %p243 = scmp.eq.s32.totalorder %s32, 1
      %p244 = por %p242, %p243
      %p245 = scmp.ne.s32.totalorder %s234, %s235
      %p246 = scmp.eq.s32.totalorder %s32, 0
      %p247 = por %p245, %p246
      %p248 = scmp.ne.s32.totalorder %s234, %s235
      %p249 = scmp.eq.s32.totalorder %s33, 1
      %p250 = por %p248, %p249
      %p252 = scmp.ne.s32.totalorder %s235, %s251
      %p253 = scmp.eq.s32.totalorder %s33, 0
      %p254 = por %p252, %p253
      %s255 = ssub.s32 %s35, %s42
      %p256 = scmp.eq.s32.totalorder %s255, 0
      %s258 = sadd.s32 %s257, 1
      %s259 = scalar_select %p256, %s257, %s258
      %p262 = pneg %p256
      %p263 = scmp.eq.s32.totalorder %s27, 1
      %p264 = por %p262, %p263
      %p265 = scmp.ne.s32.totalorder %s257, %s260
      %p266 = scmp.eq.s32.totalorder %s27, 0
      %p267 = por %p265, %p266
      %p268 = scmp.ne.s32.totalorder %s257, %s260
      %p269 = scmp.eq.s32.totalorder %s32, 1
      %p270 = por %p268, %p269
      %p271 = scmp.ne.s32.totalorder %s260, %s261
      %p272 = scmp.eq.s32.totalorder %s32, 0
      %p273 = por %p271, %p272
      %p274 = scmp.ne.s32.totalorder %s260, %s261
      %p275 = scmp.eq.s32.totalorder %s33, 1
      %p276 = por %p274, %p275
      %p278 = scmp.ne.s32.totalorder %s261, %s277
      %p279 = scmp.eq.s32.totalorder %s33, 0
      %p280 = por %p278, %p279
      %s281 = ssub.s32 %s34, %s46
      %p282 = scmp.eq.s32.totalorder %s281, 0
      %s284 = sadd.s32 %s283, 1
      %s285 = scalar_select %p282, %s283, %s284
      %p288 = pneg %p282
      %p289 = scmp.eq.s32.totalorder %s27, 1
      %p290 = por %p288, %p289
      %p291 = scmp.ne.s32.totalorder %s283, %s286
      %p292 = scmp.eq.s32.totalorder %s27, 0
      %p293 = por %p291, %p292
      %p294 = scmp.ne.s32.totalorder %s283, %s286
      %p295 = scmp.eq.s32.totalorder %s32, 1
      %p296 = por %p294, %p295
      %p297 = scmp.ne.s32.totalorder %s286, %s287
      %p298 = scmp.eq.s32.totalorder %s32, 0
      %p299 = por %p297, %p298
      %p300 = scmp.ne.s32.totalorder %s286, %s287
      %p301 = scmp.eq.s32.totalorder %s33, 1
      %p302 = por %p300, %p301
      %p304 = scmp.ne.s32.totalorder %s287, %s303
      %p305 = scmp.eq.s32.totalorder %s33, 0
      %p306 = por %p304, %p305
      %s307 = ssub.s32 %s35, %s42
      %s308 = ssub.s32 %s34, %s46
      %s309 = sor.u32 %s307, %s308
      %p310 = scmp.eq.s32.totalorder %s309, 0
      %s312 = sadd.s32 %s311, 1
      %s313 = scalar_select %p310, %s311, %s312
      %p316 = pneg %p310
      %p317 = scmp.eq.s32.totalorder %s27, 1
      %p318 = por %p316, %p317
      %p319 = scmp.ne.s32.totalorder %s311, %s314
      %p320 = scmp.eq.s32.totalorder %s27, 0
      %p321 = por %p319, %p320
      %p322 = scmp.ne.s32.totalorder %s311, %s314
      %p323 = scmp.eq.s32.totalorder %s32, 1
      %p324 = por %p322, %p323
      %p325 = scmp.ne.s32.totalorder %s314, %s315
      %p326 = scmp.eq.s32.totalorder %s32, 0
      %p327 = por %p325, %p326
      %p328 = scmp.ne.s32.totalorder %s314, %s315
      %p329 = scmp.eq.s32.totalorder %s33, 1
      %p330 = por %p328, %p329
      %p332 = scmp.ne.s32.totalorder %s315, %s331
      %p333 = scmp.eq.s32.totalorder %s33, 0
      %p334 = por %p332, %p333
      %p335 = scmp.le.s32.totalorder 1, %s27
      %p336 = scmp.lt.s32.totalorder %s27, 3
      %p337 = pnand %p335, %p336
      %p338 = pneg %p337
      // Predicated region
      $region9: #{tpu_custom_call.1} parent=5 // pred_check
        _
      $region10: #{tpu_custom_call.1} parent=5 // pred_check_branch
        %340 = sbr.rel (%p337) target = $region12
      $region11: #{tpu_custom_call.1} parent=5 // pred_region
        %s341 = ssub.s32 %s27, 1
        // Predicated region
        $region13: #{tpu_custom_call.1} parent=11 // pred_check
          %p342 = pneg %p65
        $region14: #{tpu_custom_call.1} parent=11 // pred_check_branch
          %344 = sbr.rel (%p342) target = $region16
        $region15: #{tpu_custom_call.1} parent=11 // pred_region
          %s345 = smul.u32 2, %s36
          %s347 = ssub.s32 256, 256
          %348 = vsyncadd [#allocation5], %s347
          %s349 = smul.addr %s345, 128
          %s350 = scalar_lea.hbm %s1, %s349
          %s351 = sshll.u32 [#allocation4], 4
          %s352 = int_to_ptr.vmem [resolvable:$true] %s351
          %357 = dma.hbm_to_vmem [thread:$0]  %s350, 256, %s352, [#allocation5], 128, 128, 8
        $region16: #{tpu_custom_call.1} parent=11 // pred_fallthru
          _
      $region12: #{tpu_custom_call.1} parent=5 // pred_fallthru
        _
      %p358 = scmp.lt.s32.totalorder %s27, 2
      // Predicated region
      $region17: #{tpu_custom_call.1} parent=5 // pred_check
        %p359 = pneg %p358
      $region18: #{tpu_custom_call.1} parent=5 // pred_check_branch
        %361 = sbr.rel (%p359) target = $region20
      $region19: #{tpu_custom_call.1} parent=5 // pred_region
        // Predicated region
        $region21: #{tpu_custom_call.1} parent=19 // pred_check
          %p362 = pneg %p85
        $region22: #{tpu_custom_call.1} parent=19 // pred_check_branch
          %364 = sbr.rel (%p362) target = $region24
        $region23: #{tpu_custom_call.1} parent=19 // pred_region
          %p365 = scmp.lt.s32.totalorder %s35, 1
          %s366 = scalar_select %p365, %s35, 1
          %s367 = smul.addr %s366, 4
          %s368 = smul.addr %s367, 4
          %s369 = scalar_lea.vmem %s2, %s368
        $region24: #{tpu_custom_call.1} parent=19 // pred_fallthru
          _
        // Predicated region
        $region25: #{tpu_custom_call.1} parent=19 // pred_check
          %p370 = pneg %p111
        $region26: #{tpu_custom_call.1} parent=19 // pred_check_branch
          %372 = sbr.rel (%p370) target = $region28
        $region27: #{tpu_custom_call.1} parent=19 // pred_region
          %p373 = scmp.lt.s32.totalorder %s35, 1
          %s374 = scalar_select %p373, %s35, 1
          %s375 = scalar_lea.vmem %s3, %s374
        $region28: #{tpu_custom_call.1} parent=19 // pred_fallthru
          _
        // Predicated region
        $region29: #{tpu_custom_call.1} parent=19 // pred_check
          %p376 = pneg %p137
        $region30: #{tpu_custom_call.1} parent=19 // pred_check_branch
          %378 = sbr.rel (%p376) target = $region32
        $region31: #{tpu_custom_call.1} parent=19 // pred_region
          %p379 = scmp.lt.s32.totalorder %s35, 1
          %s380 = scalar_select %p379, %s35, 1
          %s381 = smul.addr %s380, 4
          %s382 = smul.addr %s381, 4
          %s383 = scalar_lea.vmem %s4, %s382
        $region32: #{tpu_custom_call.1} parent=19 // pred_fallthru
          _
        // Predicated region
        $region33: #{tpu_custom_call.1} parent=19 // pred_check
          %p384 = pneg %p163
        $region34: #{tpu_custom_call.1} parent=19 // pred_check_branch
          %386 = sbr.rel (%p384) target = $region36
        $region35: #{tpu_custom_call.1} parent=19 // pred_region
          %p387 = scmp.lt.s32.totalorder %s35, 1
          %s388 = scalar_select %p387, %s35, 1
          %s389 = scalar_lea.vmem %s5, %s388
        $region36: #{tpu_custom_call.1} parent=19 // pred_fallthru
          _
        // Predicated region
        $region37: #{tpu_custom_call.1} parent=19 // pred_check
          %p390 = pneg %p189
        $region38: #{tpu_custom_call.1} parent=19 // pred_check_branch
          %392 = sbr.rel (%p390) target = $region40
        $region39: #{tpu_custom_call.1} parent=19 // pred_region
          %p393 = scmp.lt.s32.totalorder %s35, 1
          %s394 = scalar_select %p393, %s35, 1
          %s395 = smul.addr %s394, 4
          %s396 = smul.addr %s395, 4
          %s397 = scalar_lea.vmem %s6, %s396
        $region40: #{tpu_custom_call.1} parent=19 // pred_fallthru
          _
        // Predicated region
        $region41: #{tpu_custom_call.1} parent=19 // pred_check
          %p398 = pneg %p215
        $region42: #{tpu_custom_call.1} parent=19 // pred_check_branch
          %400 = sbr.rel (%p398) target = $region44
        $region43: #{tpu_custom_call.1} parent=19 // pred_region
          %p401 = scmp.lt.s32.totalorder %s35, 1
          %s402 = scalar_select %p401, %s35, 1
          %s403 = scalar_lea.vmem %s7, %s402
        $region44: #{tpu_custom_call.1} parent=19 // pred_fallthru
          _
        // Predicated region
        $region45: #{tpu_custom_call.1} parent=19 // pred_check
          %p404 = pneg %p241
        $region46: #{tpu_custom_call.1} parent=19 // pred_check_branch
          %406 = sbr.rel (%p404) target = $region48
        $region47: #{tpu_custom_call.1} parent=19 // pred_region
          %p407 = scmp.lt.s32.totalorder %s35, 1
          %s408 = scalar_select %p407, %s35, 1
          %s409 = smul.addr %s408, 8
          %s410 = smul.addr %s409, 4
          %s411 = scalar_lea.vmem %s8, %s410
        $region48: #{tpu_custom_call.1} parent=19 // pred_fallthru
          _
        // Predicated region
        $region49: #{tpu_custom_call.1} parent=19 // pred_check
          %p412 = pneg %p267
        $region50: #{tpu_custom_call.1} parent=19 // pred_check_branch
          %414 = sbr.rel (%p412) target = $region52
        $region51: #{tpu_custom_call.1} parent=19 // pred_region
          %p415 = scmp.lt.s32.totalorder %s35, 1
          %s416 = scalar_select %p415, %s35, 1
          %s417 = scalar_lea.vmem %s9, %s416
        $region52: #{tpu_custom_call.1} parent=19 // pred_fallthru
          _
      $region20: #{tpu_custom_call.1} parent=5 // pred_fallthru
        _
      %p418 = scmp.le.s32.totalorder 1, %s27
      %p419 = scmp.lt.s32.totalorder %s27, 3
      %p420 = pnand %p418, %p419
      %p421 = pneg %p420
      // Predicated region
      $region53: #{tpu_custom_call.1} parent=5 // pred_check
        _
      $region54: #{tpu_custom_call.1} parent=5 // pred_check_branch
        %423 = sbr.rel (%p420) target = $region56
      $region55: #{tpu_custom_call.1} parent=5 // pred_region
        %s424 = ssub.s32 %s27, 1
        // Predicated region
        $region57: #{tpu_custom_call.1} parent=55 // pred_check
          %p425 = pneg %p65
        $region58: #{tpu_custom_call.1} parent=55 // pred_check_branch
          %427 = sbr.rel (%p425) target = $region60
        $region59: #{tpu_custom_call.1} parent=55 // pred_region
          %428 = dma.done [#allocation5], 256
        $region60: #{tpu_custom_call.1} parent=55 // pred_fallthru
          _
        %p429 = pneg %p65
        %p430 = pneg %p62
        %p431 = scmp.lt.s32.totalorder %s37, 1
        %s432 = scalar_select %p431, %s37, 1
        %s433 = smul.addr %s432, 4
        %s434 = smul.addr %s433, 4
        %s435 = scalar_lea.vmem %s2, %s434
        %p436 = pneg %p91
        %p437 = pneg %p88
        %p438 = scmp.lt.s32.totalorder %s37, 1
        %s439 = scalar_select %p438, %s37, 1
        %s440 = scalar_lea.vmem %s3, %s439
        %p441 = pneg %p117
        %p442 = pneg %p114
        %p443 = scmp.lt.s32.totalorder %s37, 1
        %s444 = scalar_select %p443, %s37, 1
        %s445 = smul.addr %s444, 4
        %s446 = smul.addr %s445, 4
        %s447 = scalar_lea.vmem %s4, %s446
        %p448 = pneg %p143
        %p449 = pneg %p140
        %p450 = scmp.lt.s32.totalorder %s37, 1
        %s451 = scalar_select %p450, %s37, 1
        %s452 = scalar_lea.vmem %s5, %s451
        %p453 = pneg %p169
        %p454 = pneg %p166
        %p455 = scmp.lt.s32.totalorder %s37, 1
        %s456 = scalar_select %p455, %s37, 1
        %s457 = smul.addr %s456, 4
        %s458 = smul.addr %s457, 4
        %s459 = scalar_lea.vmem %s6, %s458
        %p460 = pneg %p195
        %p461 = pneg %p192
        %p462 = scmp.lt.s32.totalorder %s37, 1
        %s463 = scalar_select %p462, %s37, 1
        %s464 = scalar_lea.vmem %s7, %s463
        %p465 = pneg %p221
        %p466 = pneg %p218
        %p467 = scmp.lt.s32.totalorder %s37, 1
        %s468 = scalar_select %p467, %s37, 1
        %s469 = smul.addr %s468, 8
        %s470 = smul.addr %s469, 4
        %s471 = scalar_lea.vmem %s8, %s470
        %p472 = pneg %p247
        %p473 = pneg %p244
        %p474 = scmp.lt.s32.totalorder %s37, 1
        %s475 = scalar_select %p474, %s37, 1
        %s476 = scalar_lea.vmem %s9, %s475
        %p477 = pneg %p273
        %p478 = pneg %p270
        %p479 = pneg %p299
        %p480 = pneg %p296
        %p481 = pneg %p327
        %p482 = pneg %p324
        %s483 = sand.u32 %s314, 1
        %s484 = scalar_lea.sflag [#allocation9], %s483
        %s485 = sand.u32 %s314, 1
        %s486 = smul.addr %s485, 32
        %s487 = scalar_lea.vmem [#allocation8], %s486
        %s488 = smul.u32 2, %s36
        %p489 = scmp.lt.s32.totalorder %s37, 1
        %s490 = scalar_select %p489, %s37, 1
        %s491 = smul.addr %s490, 4
        %s492 = smul.addr %s491, 4
        %s493 = scalar_lea.vmem %s2, %s492
        %p494 = scmp.lt.s32.totalorder %s37, 1
        %s495 = scalar_select %p494, %s37, 1
        %s496 = scalar_lea.vmem %s3, %s495
        %p497 = scmp.lt.s32.totalorder %s37, 1
        %s498 = scalar_select %p497, %s37, 1
        %s499 = smul.addr %s498, 4
        %s500 = smul.addr %s499, 4
        %s501 = scalar_lea.vmem %s4, %s500
        %p502 = scmp.lt.s32.totalorder %s37, 1
        %s503 = scalar_select %p502, %s37, 1
        %s504 = scalar_lea.vmem %s5, %s503
        %p505 = scmp.lt.s32.totalorder %s37, 1
        %s506 = scalar_select %p505, %s37, 1
        %s507 = smul.addr %s506, 4
        %s508 = smul.addr %s507, 4
        %s509 = scalar_lea.vmem %s6, %s508
        %p510 = scmp.lt.s32.totalorder %s37, 1
        %s511 = scalar_select %p510, %s37, 1
        %s512 = scalar_lea.vmem %s7, %s511
        %p513 = scmp.lt.s32.totalorder %s37, 1
        %s514 = scalar_select %p513, %s37, 1
        %s515 = smul.addr %s514, 8
        %s516 = smul.addr %s515, 4
        %s517 = scalar_lea.vmem %s8, %s516
        %p518 = scmp.lt.s32.totalorder %s37, 1
        %s519 = scalar_select %p518, %s37, 1
        %s520 = scalar_lea.vmem %s9, %s519
        %s521 = smul.u32 2, %s36
        %s522 = smul.u32 2, %s36
        %p524 = scmp.eq.s32.totalorder %s37, 0
        // Predicated region
        $region61: #{tpu_custom_call.1} parent=55 // pred_check
          %p525 = pneg %p524
        $region62: #{tpu_custom_call.1} parent=55 // pred_check_branch
          %527 = sbr.rel (%p525) target = $region64
        $region63: #{tpu_custom_call.1} parent=55 // pred_region
          %v528 = vld [vmem:[#allocation4] sm:$0xff]
          %v529 = vld [vmem:[#allocation4 + $0x8] sm:$0xff]
          %vm530 = vcmask 261120
          %531 = vst.msk [vmem:[#allocation7] sm:$0xff] %vm530, %v528
          %532 = vst.msk [vmem:[#allocation7 + $0x8] sm:$0xff] %vm530, %v529
        $region64: #{tpu_custom_call.1} parent=55 // pred_fallthru
          _
        %v533 = vld [vmem:[#allocation7] sm:$0xff]
        %v534 = vld [vmem:[#allocation7 + $0x8] sm:$0xff]
        %s535 = smul.u32 %s37, 2
        %s536 = sld [smem:[#allocation3 + %s535]]
        %v537 = vmul.f32 %v533, %v533
        %v538 = vmul.f32 %v534, %v534
        %vm539 = vcmask 261120
        %v540 = vsel %vm539, %v537, 0.0
        %541 = vadd.xlane.f32.xlu0 %v540
        %v542 = vpop.xlane.xlu0 %541
        %v543 = vsel %vm539, %v538, 0.0
        %544 = vadd.xlane.f32.xlu0 %v543
        %v545 = vpop.xlane.xlu0 %544
        %v546 = vrsqrt.pop %v542
        %v547 = vmul.f32 %v542, %v546
        %vm548 = vcmp.eq.f32.partialorder %v542, inf
        %v549 = vsel %vm548, %v542, %v547
        %vm550 = vcmp.eq.f32.partialorder %v542, 0.0
        %v551 = vand.u32 %v542, 2147483648
        %v552 = vsel %vm550, %v551, %v549
        %v553 = vrsqrt.pop %v545
        %v554 = vmul.f32 %v545, %v553
        %vm555 = vcmp.eq.f32.partialorder %v545, inf
        %v556 = vsel %vm555, %v545, %v554
        %vm557 = vcmp.eq.f32.partialorder %v545, 0.0
        %v558 = vand.u32 %v545, 2147483648
        %v559 = vsel %vm557, %v558, %v556
        %v560 = vmax.f32 %v552, 1e-05
        %v561 = vmax.f32 %v559, 1e-05
        %v562 = vstv %s536
        %v563 = vrcp.pop %v560
        %v564 = vmul.f32 %v562, %v563
        %v565 = vrcp.pop %v561
        %v566 = vmul.f32 %v562, %v565
        %v567 = vmul.f32 %v533, %v564
        %v568 = vmul.f32 %v534, %v566
        %v569 = vpack.c.bf16 %v568, %v567
        %v570 = vld [vmem:[%s493] sm:$0xf]
        %v571 = vld [vmem:[%s493 + $0x4] sm:$0xf]
        %v572 = vld [vmem:[%s493 + $0x8] sm:$0xf]
        %v573 = vld [vmem:[%s493 + $0xc] sm:$0xf]
        %v574 = vld [vmem:[%s496] sm:$0x1]
        %v576 = vlaneseq
        %v577 = vshrl.u32 %v576, 7
        %v578 = vsub.s32 0, %v577
        %v579 = vrot.slane %v574, %v578
        %v585 = vunpack.c.l.b16 %v570
        %v586 = vunpack.c.l.b16 %v571
        %v587 = vunpack.c.l.b16 %v572
        %v588 = vunpack.c.l.b16 %v573
        %v589 = vpack.c.b16 %v586, %v585
        %v590 = vpack.c.b16 %v588, %v587
        %v594 = vsel %vm539, %v569, 0
        %596 = vmatprep.subr.bf16.mxu0 0
        %597 = vmatpush1.bf16.msra.mxu0 %v589
        %598 = vmatprep.subr.bf16.mxu0 0
        %599 = vmatpush1.bf16.msra.mxu0 %v590
        %600 = vmatprep.subr.bf16.mxu0 0
        %601 = vmatpush1.bf16.msra.mxu0 0
        %602 = vmatprep.subr.bf16.mxu0 0
        %603 = vmatpush1.bf16.msra.mxu0 0
        %604 = vmatprep.subr.bf16.mxu0 0
        %605 = vmatpush1.bf16.msra.mxu0 0
        %606 = vmatprep.subr.bf16.mxu0 0
        %607 = vmatpush1.bf16.msra.mxu0 0
        %608 = vmatprep.subr.bf16.mxu0 0
        %609 = vmatpush1.bf16.msra.mxu0 0
        %610 = vmatprep.subr.bf16.mxu0 0
        %611 = vmatpush1.bf16.msra.mxu0 0
        %612 = vmatprep.subr.bf16.mxu0 0
        %613 = vmatpush1.bf16.msra.mxu0 0
        %614 = vmatprep.subr.bf16.mxu0 0
        %615 = vmatpush1.bf16.msra.mxu0 0
        %616 = vmatprep.subr.bf16.mxu0 0
        %617 = vmatpush1.bf16.msra.mxu0 0
        %618 = vmatprep.subr.bf16.mxu0 0
        %619 = vmatpush1.bf16.msra.mxu0 0
        %620 = vmatprep.subr.bf16.mxu0 0
        %621 = vmatpush1.bf16.msra.mxu0 0
        %622 = vmatprep.subr.bf16.mxu0 0
        %623 = vmatpush1.bf16.msra.mxu0 0
        %624 = vmatprep.subr.bf16.mxu0 0
        %625 = vmatpush1.bf16.msra.mxu0 0
        %626 = vmatprep.subr.bf16.mxu0 0
        %627 = vmatpush1.bf16.msra.mxu0 0
        %628 = vmatprep.mubr.bf16.mxu0 0
        %629 = vmatmul.mubr.bf16.gmra.mrb[0].mxu0 %v594
        %v630 = vpop.f32.mrb[0].mxu0
        %v631 = vadd.f32 %v579, %v630
        %v632 = vpop.f32.mrb[0].mxu0
        %v633 = vpop.f32.mrb[0].mxu0
        %v634 = vadd.f32 %v579, %v633
        %v635 = vpop.f32.mrb[0].mxu0
        %636 = vdwg.mxu0
        %v637 = vpack.c.bf16 %v631, %v631
        %v638 = vpack.c.bf16 %v634, %v634
        %640 = vrot.lane.b32.xlu0 %v637, 96
        %v641 = vpop.permute.xlu0 %640
        %vm642 = vcmask 64512
        %v644 = vsel %vm642, %v637, 0
        %v647 = vsel %vm642, %v641, 0
        %649 = vmatprep.subr.bf16.mxu0 0
        %650 = vmatpush1.bf16.xpose.msra.mxu0 %v647
        %651 = vmatprep.subr.bf16.mxu0 0
        %652 = vmatpush1.bf16.xpose.msra.mxu0 0
        %653 = vmatprep.subr.bf16.mxu0 0
        %654 = vmatpush1.bf16.xpose.msra.mxu0 0
        %655 = vmatprep.subr.bf16.mxu0 0
        %656 = vmatpush1.bf16.xpose.msra.mxu0 0
        %657 = vmatprep.subr.bf16.mxu0 0
        %658 = vmatpush1.bf16.xpose.msra.mxu0 0
        %659 = vmatprep.subr.bf16.mxu0 0
        %660 = vmatpush1.bf16.xpose.msra.mxu0 0
        %661 = vmatprep.subr.bf16.mxu0 0
        %662 = vmatpush1.bf16.xpose.msra.mxu0 0
        %663 = vmatprep.subr.bf16.mxu0 0
        %664 = vmatpush1.bf16.xpose.msra.mxu0 0
        %665 = vmatprep.subr.bf16.mxu0 0
        %666 = vmatpush1.bf16.xpose.msra.mxu0 0
        %667 = vmatprep.subr.bf16.mxu0 0
        %668 = vmatpush1.bf16.xpose.msra.mxu0 0
        %669 = vmatprep.subr.bf16.mxu0 0
        %670 = vmatpush1.bf16.xpose.msra.mxu0 0
        %671 = vmatprep.subr.bf16.mxu0 0
        %672 = vmatpush1.bf16.xpose.msra.mxu0 0
        %673 = vmatprep.subr.bf16.mxu0 0
        %674 = vmatpush1.bf16.xpose.msra.mxu0 0
        %675 = vmatprep.subr.bf16.mxu0 0
        %676 = vmatpush1.bf16.xpose.msra.mxu0 0
        %677 = vmatprep.subr.bf16.mxu0 0
        %678 = vmatpush1.bf16.xpose.msra.mxu0 0
        %679 = vmatprep.subr.bf16.mxu0 0
        %680 = vmatpush1.bf16.xpose.msra.mxu0 0
        %681 = vmatprep.mubr.bf16.mxu0 0
        %682 = vmatmul.mubr.bf16.gmra.mrb[0].mxu0 %v644
        %v683 = vpop.f32.mrb[0].mxu0
        %v684 = vadd.f32 0.0, %v683
        %v685 = vpop.f32.mrb[0].mxu0
        %v686 = vpop.f32.mrb[0].mxu0
        %v687 = vpop.f32.mrb[0].mxu0
        %688 = vdwg.mxu0
        %690 = vrot.lane.b32.xlu0 %v638, 96
        %v691 = vpop.permute.xlu0 %690
        %v693 = vsel %vm642, %v638, 0
        %v696 = vsel %vm642, %v691, 0
        %698 = vmatprep.subr.bf16.mxu0 0
        %699 = vmatpush1.bf16.xpose.msra.mxu0 %v696
        %700 = vmatprep.subr.bf16.mxu0 0
        %701 = vmatpush1.bf16.xpose.msra.mxu0 0
        %702 = vmatprep.subr.bf16.mxu0 0
        %703 = vmatpush1.bf16.xpose.msra.mxu0 0
        %704 = vmatprep.subr.bf16.mxu0 0
        %705 = vmatpush1.bf16.xpose.msra.mxu0 0
        %706 = vmatprep.subr.bf16.mxu0 0
        %707 = vmatpush1.bf16.xpose.msra.mxu0 0
        %708 = vmatprep.subr.bf16.mxu0 0
        %709 = vmatpush1.bf16.xpose.msra.mxu0 0
        %710 = vmatprep.subr.bf16.mxu0 0
        %711 = vmatpush1.bf16.xpose.msra.mxu0 0
        %712 = vmatprep.subr.bf16.mxu0 0
        %713 = vmatpush1.bf16.xpose.msra.mxu0 0
        %714 = vmatprep.subr.bf16.mxu0 0
        %715 = vmatpush1.bf16.xpose.msra.mxu0 0
        %716 = vmatprep.subr.bf16.mxu0 0
        %717 = vmatpush1.bf16.xpose.msra.mxu0 0
        %718 = vmatprep.subr.bf16.mxu0 0
        %719 = vmatpush1.bf16.xpose.msra.mxu0 0
        %720 = vmatprep.subr.bf16.mxu0 0
        %721 = vmatpush1.bf16.xpose.msra.mxu0 0
        %722 = vmatprep.subr.bf16.mxu0 0
        %723 = vmatpush1.bf16.xpose.msra.mxu0 0
        %724 = vmatprep.subr.bf16.mxu0 0
        %725 = vmatpush1.bf16.xpose.msra.mxu0 0
        %726 = vmatprep.subr.bf16.mxu0 0
        %727 = vmatpush1.bf16.xpose.msra.mxu0 0
        %728 = vmatprep.subr.bf16.mxu0 0
        %729 = vmatpush1.bf16.xpose.msra.mxu0 0
        %730 = vmatprep.mubr.bf16.mxu0 0
        %731 = vmatmul.mubr.bf16.gmra.mrb[0].mxu0 %v693
        %v732 = vpop.f32.mrb[0].mxu0
        %v733 = vadd.f32 0.0, %v732
        %v734 = vpop.f32.mrb[0].mxu0
        %v735 = vpop.f32.mrb[0].mxu0
        %v736 = vpop.f32.mrb[0].mxu0
        %737 = vdwg.mxu0
        %v738 = vmul.f32 %v684, 0.35355338
        %v739 = vmul.f32 %v733, 0.35355338
        %v740 = vsel %vm642, %v738, -inf
        %741 = vmax.xlane.f32.xlu0 %v740
        %v742 = vpop.xlane.xlu0 %741
        %v743 = vsel %vm642, %v739, -inf
        %744 = vmax.xlane.f32.xlu0 %v743
        %v745 = vpop.xlane.xlu0 %744
        %v746 = vsub.f32 %v738, %v742
        %v747 = vsub.f32 %v739, %v745
        %v748 = vmul.f32 %v746, 1.442695
        %v749 = vpow.pop %v748
        %v750 = vmul.f32 %v747, 1.442695
        %v751 = vpow.pop %v750
        %v752 = vsel %vm642, %v749, 0.0
        %753 = vadd.xlane.f32.xlu0 %v752
        %v754 = vpop.xlane.xlu0 %753
        %v755 = vsel %vm642, %v751, 0.0
        %756 = vadd.xlane.f32.xlu0 %v755
        %v757 = vpop.xlane.xlu0 %756
        %v758 = vrcp.pop %v754
        %v759 = vmul.f32 %v749, %v758
        %v760 = vrcp.pop %v757
        %v761 = vmul.f32 %v751, %v760
        %v762 = vpack.c.bf16 %v759, %v759
        %v763 = vpack.c.bf16 %v761, %v761
        %vm764 = vcmask 60416
        %765 = vst.msk [vmem:[%s487] sm:$0xf] %vm764, %v762
        %766 = vst.msk [vmem:[%s487 + $0x10] sm:$0xf] %vm764, %v763
        %767 = vrot.lane.b32.xlu0 %v637, 64
        %v768 = vpop.permute.xlu0 %767
        %v770 = vsel %vm642, %v762, 0
        %vm772 = vcmask 1043456
        %v774 = vsel %vm772, %v768, 0
        %776 = vmatprep.subr.bf16.mxu0 0
        %777 = vmatpush1.bf16.msra.mxu0 %v774
        %778 = vmatprep.subr.bf16.mxu0 0
        %779 = vmatpush1.bf16.msra.mxu0 0
        %780 = vmatprep.subr.bf16.mxu0 0
        %781 = vmatpush1.bf16.msra.mxu0 0
        %782 = vmatprep.subr.bf16.mxu0 0
        %783 = vmatpush1.bf16.msra.mxu0 0
        %784 = vmatprep.subr.bf16.mxu0 0
        %785 = vmatpush1.bf16.msra.mxu0 0
        %786 = vmatprep.subr.bf16.mxu0 0
        %787 = vmatpush1.bf16.msra.mxu0 0
        %788 = vmatprep.subr.bf16.mxu0 0
        %789 = vmatpush1.bf16.msra.mxu0 0
        %790 = vmatprep.subr.bf16.mxu0 0
        %791 = vmatpush1.bf16.msra.mxu0 0
        %792 = vmatprep.subr.bf16.mxu0 0
        %793 = vmatpush1.bf16.msra.mxu0 0
        %794 = vmatprep.subr.bf16.mxu0 0
        %795 = vmatpush1.bf16.msra.mxu0 0
        %796 = vmatprep.subr.bf16.mxu0 0
        %797 = vmatpush1.bf16.msra.mxu0 0
        %798 = vmatprep.subr.bf16.mxu0 0
        %799 = vmatpush1.bf16.msra.mxu0 0
        %800 = vmatprep.subr.bf16.mxu0 0
        %801 = vmatpush1.bf16.msra.mxu0 0
        %802 = vmatprep.subr.bf16.mxu0 0
        %803 = vmatpush1.bf16.msra.mxu0 0
        %804 = vmatprep.subr.bf16.mxu0 0
        %805 = vmatpush1.bf16.msra.mxu0 0
        %806 = vmatprep.subr.bf16.mxu0 0
        %807 = vmatpush1.bf16.msra.mxu0 0
        %808 = vmatprep.mubr.bf16.mxu0 0
        %809 = vmatmul.mubr.bf16.gmra.mrb[0].mxu0 %v770
        %v810 = vpop.f32.mrb[0].mxu0
        %v811 = vadd.f32 0.0, %v810
        %v812 = vpop.f32.mrb[0].mxu0
        %v813 = vpop.f32.mrb[0].mxu0
        %v814 = vpop.f32.mrb[0].mxu0
        %815 = vdwg.mxu0
        %816 = vrot.lane.b32.xlu0 %v638, 64
        %v817 = vpop.permute.xlu0 %816
        %v819 = vsel %vm642, %v763, 0
        %v822 = vsel %vm772, %v817, 0
        %824 = vmatprep.subr.bf16.mxu0 0
        %825 = vmatpush1.bf16.msra.mxu0 %v822
        %826 = vmatprep.subr.bf16.mxu0 0
        %827 = vmatpush1.bf16.msra.mxu0 0
        %828 = vmatprep.subr.bf16.mxu0 0
        %829 = vmatpush1.bf16.msra.mxu0 0
        %830 = vmatprep.subr.bf16.mxu0 0
        %831 = vmatpush1.bf16.msra.mxu0 0
        %832 = vmatprep.subr.bf16.mxu0 0
        %833 = vmatpush1.bf16.msra.mxu0 0
        %834 = vmatprep.subr.bf16.mxu0 0
        %835 = vmatpush1.bf16.msra.mxu0 0
        %836 = vmatprep.subr.bf16.mxu0 0
        %837 = vmatpush1.bf16.msra.mxu0 0
        %838 = vmatprep.subr.bf16.mxu0 0
        %839 = vmatpush1.bf16.msra.mxu0 0
        %840 = vmatprep.subr.bf16.mxu0 0
        %841 = vmatpush1.bf16.msra.mxu0 0
        %842 = vmatprep.subr.bf16.mxu0 0
        %843 = vmatpush1.bf16.msra.mxu0 0
        %844 = vmatprep.subr.bf16.mxu0 0
        %845 = vmatpush1.bf16.msra.mxu0 0
        %846 = vmatprep.subr.bf16.mxu0 0
        %847 = vmatpush1.bf16.msra.mxu0 0
        %848 = vmatprep.subr.bf16.mxu0 0
        %849 = vmatpush1.bf16.msra.mxu0 0
        %850 = vmatprep.subr.bf16.mxu0 0
        %851 = vmatpush1.bf16.msra.mxu0 0
        %852 = vmatprep.subr.bf16.mxu0 0
        %853 = vmatpush1.bf16.msra.mxu0 0
        %854 = vmatprep.subr.bf16.mxu0 0
        %855 = vmatpush1.bf16.msra.mxu0 0
        %856 = vmatprep.mubr.bf16.mxu0 0
        %857 = vmatmul.mubr.bf16.gmra.mrb[0].mxu0 %v819
        %v858 = vpop.f32.mrb[0].mxu0
        %v859 = vadd.f32 0.0, %v858
        %v860 = vpop.f32.mrb[0].mxu0
        %v861 = vpop.f32.mrb[0].mxu0
        %v862 = vpop.f32.mrb[0].mxu0
        %863 = vdwg.mxu0
        %864 = vrot.lane.b32.xlu0 %v637, 120
        %v865 = vpop.permute.xlu0 %864
        %866 = vrot.lane.b32.xlu0 %v637, 88
        %v867 = vpop.permute.xlu0 %866
        %v869 = vsel %vm642, %v865, 0
        %v872 = vsel %vm642, %v867, 0
        %874 = vmatprep.subr.bf16.mxu0 0
        %875 = vmatpush1.bf16.xpose.msra.mxu0 %v872
        %876 = vmatprep.subr.bf16.mxu0 0
        %877 = vmatpush1.bf16.xpose.msra.mxu0 0
        %878 = vmatprep.subr.bf16.mxu0 0
        %879 = vmatpush1.bf16.xpose.msra.mxu0 0
        %880 = vmatprep.subr.bf16.mxu0 0
        %881 = vmatpush1.bf16.xpose.msra.mxu0 0
        %882 = vmatprep.subr.bf16.mxu0 0
        %883 = vmatpush1.bf16.xpose.msra.mxu0 0
        %884 = vmatprep.subr.bf16.mxu0 0
        %885 = vmatpush1.bf16.xpose.msra.mxu0 0
        %886 = vmatprep.subr.bf16.mxu0 0
        %887 = vmatpush1.bf16.xpose.msra.mxu0 0
        %888 = vmatprep.subr.bf16.mxu0 0
        %889 = vmatpush1.bf16.xpose.msra.mxu0 0
        %890 = vmatprep.subr.bf16.mxu0 0
        %891 = vmatpush1.bf16.xpose.msra.mxu0 0
        %892 = vmatprep.subr.bf16.mxu0 0
        %893 = vmatpush1.bf16.xpose.msra.mxu0 0
        %894 = vmatprep.subr.bf16.mxu0 0
        %895 = vmatpush1.bf16.xpose.msra.mxu0 0
        %896 = vmatprep.subr.bf16.mxu0 0
        %897 = vmatpush1.bf16.xpose.msra.mxu0 0
        %898 = vmatprep.subr.bf16.mxu0 0
        %899 = vmatpush1.bf16.xpose.msra.mxu0 0
        %900 = vmatprep.subr.bf16.mxu0 0
        %901 = vmatpush1.bf16.xpose.msra.mxu0 0
        %902 = vmatprep.subr.bf16.mxu0 0
        %903 = vmatpush1.bf16.xpose.msra.mxu0 0
        %904 = vmatprep.subr.bf16.mxu0 0
        %905 = vmatpush1.bf16.xpose.msra.mxu0 0
        %906 = vmatprep.mubr.bf16.mxu0 0
        %907 = vmatmul.mubr.bf16.gmra.mrb[0].mxu0 %v869
        %v908 = vpop.f32.mrb[0].mxu0
        %v909 = vadd.f32 0.0, %v908
        %v910 = vpop.f32.mrb[0].mxu0
        %v911 = vpop.f32.mrb[0].mxu0
        %v912 = vpop.f32.mrb[0].mxu0
        %913 = vdwg.mxu0
        %914 = vrot.lane.b32.xlu0 %v638, 120
        %v915 = vpop.permute.xlu0 %914
        %916 = vrot.lane.b32.xlu0 %v638, 88
        %v917 = vpop.permute.xlu0 %916
        %v919 = vsel %vm642, %v915, 0
        %v922 = vsel %vm642, %v917, 0
        %924 = vmatprep.subr.bf16.mxu0 0
        %925 = vmatpush1.bf16.xpose.msra.mxu0 %v922
        %926 = vmatprep.subr.bf16.mxu0 0
        %927 = vmatpush1.bf16.xpose.msra.mxu0 0
        %928 = vmatprep.subr.bf16.mxu0 0
        %929 = vmatpush1.bf16.xpose.msra.mxu0 0
        %930 = vmatprep.subr.bf16.mxu0 0
        %931 = vmatpush1.bf16.xpose.msra.mxu0 0
        %932 = vmatprep.subr.bf16.mxu0 0
        %933 = vmatpush1.bf16.xpose.msra.mxu0 0
        %934 = vmatprep.subr.bf16.mxu0 0
        %935 = vmatpush1.bf16.xpose.msra.mxu0 0
        %936 = vmatprep.subr.bf16.mxu0 0
        %937 = vmatpush1.bf16.xpose.msra.mxu0 0
        %938 = vmatprep.subr.bf16.mxu0 0
        %939 = vmatpush1.bf16.xpose.msra.mxu0 0
        %940 = vmatprep.subr.bf16.mxu0 0
        %941 = vmatpush1.bf16.xpose.msra.mxu0 0
        %942 = vmatprep.subr.bf16.mxu0 0
        %943 = vmatpush1.bf16.xpose.msra.mxu0 0
        %944 = vmatprep.subr.bf16.mxu0 0
        %945 = vmatpush1.bf16.xpose.msra.mxu0 0
        %946 = vmatprep.subr.bf16.mxu0 0
        %947 = vmatpush1.bf16.xpose.msra.mxu0 0
        %948 = vmatprep.subr.bf16.mxu0 0
        %949 = vmatpush1.bf16.xpose.msra.mxu0 0
        %950 = vmatprep.subr.bf16.mxu0 0
        %951 = vmatpush1.bf16.xpose.msra.mxu0 0
        %952 = vmatprep.subr.bf16.mxu0 0
        %953 = vmatpush1.bf16.xpose.msra.mxu0 0
        %954 = vmatprep.subr.bf16.mxu0 0
        %955 = vmatpush1.bf16.xpose.msra.mxu0 0
        %956 = vmatprep.mubr.bf16.mxu0 0
        %957 = vmatmul.mubr.bf16.gmra.mrb[0].mxu0 %v919
        %v958 = vpop.f32.mrb[0].mxu0
        %v959 = vadd.f32 0.0, %v958
        %v960 = vpop.f32.mrb[0].mxu0
        %v961 = vpop.f32.mrb[0].mxu0
        %v962 = vpop.f32.mrb[0].mxu0
        %963 = vdwg.mxu0
        %v964 = vmul.f32 %v909, 0.35355338
        %v965 = vmul.f32 %v959, 0.35355338
        %v966 = vsel %vm642, %v964, -inf
        %967 = vmax.xlane.f32.xlu0 %v966
        %v968 = vpop.xlane.xlu0 %967
        %v969 = vsel %vm642, %v965, -inf
        %970 = vmax.xlane.f32.xlu0 %v969
        %v971 = vpop.xlane.xlu0 %970
        %v972 = vsub.f32 %v964, %v968
        %v973 = vsub.f32 %v965, %v971
        %v974 = vmul.f32 %v972, 1.442695
        %v975 = vpow.pop %v974
        %v976 = vmul.f32 %v973, 1.442695
        %v977 = vpow.pop %v976
        %v978 = vsel %vm642, %v975, 0.0
        %979 = vadd.xlane.f32.xlu0 %v978
        %v980 = vpop.xlane.xlu0 %979
        %v981 = vsel %vm642, %v977, 0.0
        %982 = vadd.xlane.f32.xlu0 %v981
        %v983 = vpop.xlane.xlu0 %982
        %v984 = vrcp.pop %v980
        %v985 = vmul.f32 %v975, %v984
        %v986 = vrcp.pop %v983
        %v987 = vmul.f32 %v977, %v986
        %v988 = vpack.c.bf16 %v985, %v985
        %v989 = vpack.c.bf16 %v987, %v987
        %s990 = scalar_lea.vmem %s487, 4 [#allocation8]
        %991 = vst.msk [vmem:[%s990] sm:$0xf] %vm764, %v988
        %992 = vst.msk [vmem:[%s990 + $0x10] sm:$0xf] %vm764, %v989
        %993 = vrot.lane.b32.xlu0 %v637, 56
        %v994 = vpop.permute.xlu0 %993
        %v996 = vsel %vm642, %v988, 0
        %v999 = vsel %vm772, %v994, 0
        %1001 = vmatprep.subr.bf16.mxu0 0
        %1002 = vmatpush1.bf16.msra.mxu0 %v999
        %1003 = vmatprep.subr.bf16.mxu0 0
        %1004 = vmatpush1.bf16.msra.mxu0 0
        %1005 = vmatprep.subr.bf16.mxu0 0
        %1006 = vmatpush1.bf16.msra.mxu0 0
        %1007 = vmatprep.subr.bf16.mxu0 0
        %1008 = vmatpush1.bf16.msra.mxu0 0
        %1009 = vmatprep.subr.bf16.mxu0 0
        %1010 = vmatpush1.bf16.msra.mxu0 0
        %1011 = vmatprep.subr.bf16.mxu0 0
        %1012 = vmatpush1.bf16.msra.mxu0 0
        %1013 = vmatprep.subr.bf16.mxu0 0
        %1014 = vmatpush1.bf16.msra.mxu0 0
        %1015 = vmatprep.subr.bf16.mxu0 0
        %1016 = vmatpush1.bf16.msra.mxu0 0
        %1017 = vmatprep.subr.bf16.mxu0 0
        %1018 = vmatpush1.bf16.msra.mxu0 0
        %1019 = vmatprep.subr.bf16.mxu0 0
        %1020 = vmatpush1.bf16.msra.mxu0 0
        %1021 = vmatprep.subr.bf16.mxu0 0
        %1022 = vmatpush1.bf16.msra.mxu0 0
        %1023 = vmatprep.subr.bf16.mxu0 0
        %1024 = vmatpush1.bf16.msra.mxu0 0
        %1025 = vmatprep.subr.bf16.mxu0 0
        %1026 = vmatpush1.bf16.msra.mxu0 0
        %1027 = vmatprep.subr.bf16.mxu0 0
        %1028 = vmatpush1.bf16.msra.mxu0 0
        %1029 = vmatprep.subr.bf16.mxu0 0
        %1030 = vmatpush1.bf16.msra.mxu0 0
        %1031 = vmatprep.subr.bf16.mxu0 0
        %1032 = vmatpush1.bf16.msra.mxu0 0
        %1033 = vmatprep.mubr.bf16.mxu0 0
        %1034 = vmatmul.mubr.bf16.gmra.mrb[0].mxu0 %v996
        %v1035 = vpop.f32.mrb[0].mxu0
        %v1036 = vadd.f32 0.0, %v1035
        %v1037 = vpop.f32.mrb[0].mxu0
        %v1038 = vpop.f32.mrb[0].mxu0
        %v1039 = vpop.f32.mrb[0].mxu0
        %1040 = vdwg.mxu0
        %1041 = vrot.lane.b32.xlu0 %v638, 56
        %v1042 = vpop.permute.xlu0 %1041
        %v1044 = vsel %vm642, %v989, 0
        %v1047 = vsel %vm772, %v1042, 0
        %1049 = vmatprep.subr.bf16.mxu0 0
        %1050 = vmatpush1.bf16.msra.mxu0 %v1047
        %1051 = vmatprep.subr.bf16.mxu0 0
        %1052 = vmatpush1.bf16.msra.mxu0 0
        %1053 = vmatprep.subr.bf16.mxu0 0
        %1054 = vmatpush1.bf16.msra.mxu0 0
        %1055 = vmatprep.subr.bf16.mxu0 0
        %1056 = vmatpush1.bf16.msra.mxu0 0
        %1057 = vmatprep.subr.bf16.mxu0 0
        %1058 = vmatpush1.bf16.msra.mxu0 0
        %1059 = vmatprep.subr.bf16.mxu0 0
        %1060 = vmatpush1.bf16.msra.mxu0 0
        %1061 = vmatprep.subr.bf16.mxu0 0
        %1062 = vmatpush1.bf16.msra.mxu0 0
        %1063 = vmatprep.subr.bf16.mxu0 0
        %1064 = vmatpush1.bf16.msra.mxu0 0
        %1065 = vmatprep.subr.bf16.mxu0 0
        %1066 = vmatpush1.bf16.msra.mxu0 0
        %1067 = vmatprep.subr.bf16.mxu0 0
        %1068 = vmatpush1.bf16.msra.mxu0 0
        %1069 = vmatprep.subr.bf16.mxu0 0
        %1070 = vmatpush1.bf16.msra.mxu0 0
        %1071 = vmatprep.subr.bf16.mxu0 0
        %1072 = vmatpush1.bf16.msra.mxu0 0
        %1073 = vmatprep.subr.bf16.mxu0 0
        %1074 = vmatpush1.bf16.msra.mxu0 0
        %1075 = vmatprep.subr.bf16.mxu0 0
        %1076 = vmatpush1.bf16.msra.mxu0 0
        %1077 = vmatprep.subr.bf16.mxu0 0
        %1078 = vmatpush1.bf16.msra.mxu0 0
        %1079 = vmatprep.subr.bf16.mxu0 0
        %1080 = vmatpush1.bf16.msra.mxu0 0
        %1081 = vmatprep.mubr.bf16.mxu0 0
        %1082 = vmatmul.mubr.bf16.gmra.mrb[0].mxu0 %v1044
        %v1083 = vpop.f32.mrb[0].mxu0
        %v1084 = vadd.f32 0.0, %v1083
        %v1085 = vpop.f32.mrb[0].mxu0
        %v1086 = vpop.f32.mrb[0].mxu0
        %v1087 = vpop.f32.mrb[0].mxu0
        %1088 = vdwg.mxu0
        %1089 = vrot.lane.b32.xlu0 %v637, 112
        %v1090 = vpop.permute.xlu0 %1089
        %1091 = vrot.lane.b32.xlu0 %v637, 80
        %v1092 = vpop.permute.xlu0 %1091
        %v1094 = vsel %vm642, %v1090, 0
        %v1097 = vsel %vm642, %v1092, 0
        %1099 = vmatprep.subr.bf16.mxu0 0
        %1100 = vmatpush1.bf16.xpose.msra.mxu0 %v1097
        %1101 = vmatprep.subr.bf16.mxu0 0
        %1102 = vmatpush1.bf16.xpose.msra.mxu0 0
        %1103 = vmatprep.subr.bf16.mxu0 0
        %1104 = vmatpush1.bf16.xpose.msra.mxu0 0
        %1105 = vmatprep.subr.bf16.mxu0 0
        %1106 = vmatpush1.bf16.xpose.msra.mxu0 0
        %1107 = vmatprep.subr.bf16.mxu0 0
        %1108 = vmatpush1.bf16.xpose.msra.mxu0 0
        %1109 = vmatprep.subr.bf16.mxu0 0
        %1110 = vmatpush1.bf16.xpose.msra.mxu0 0
        %1111 = vmatprep.subr.bf16.mxu0 0
        %1112 = vmatpush1.bf16.xpose.msra.mxu0 0
        %1113 = vmatprep.subr.bf16.mxu0 0
        %1114 = vmatpush1.bf16.xpose.msra.mxu0 0
        %1115 = vmatprep.subr.bf16.mxu0 0
        %1116 = vmatpush1.bf16.xpose.msra.mxu0 0
        %1117 = vmatprep.subr.bf16.mxu0 0
        %1118 = vmatpush1.bf16.xpose.msra.mxu0 0
        %1119 = vmatprep.subr.bf16.mxu0 0
        %1120 = vmatpush1.bf16.xpose.msra.mxu0 0
        %1121 = vmatprep.subr.bf16.mxu0 0
        %1122 = vmatpush1.bf16.xpose.msra.mxu0 0
        %1123 = vmatprep.subr.bf16.mxu0 0
        %1124 = vmatpush1.bf16.xpose.msra.mxu0 0
        %1125 = vmatprep.subr.bf16.mxu0 0
        %1126 = vmatpush1.bf16.xpose.msra.mxu0 0
        %1127 = vmatprep.subr.bf16.mxu0 0
        %1128 = vmatpush1.bf16.xpose.msra.mxu0 0
        %1129 = vmatprep.subr.bf16.mxu0 0
        %1130 = vmatpush1.bf16.xpose.msra.mxu0 0
        %1131 = vmatprep.mubr.bf16.mxu0 0
        %1132 = vmatmul.mubr.bf16.gmra.mrb[0].mxu0 %v1094
        %v1133 = vpop.f32.mrb[0].mxu0
        %v1134 = vadd.f32 0.0, %v1133
        %v1135 = vpop.f32.mrb[0].mxu0
        %v1136 = vpop.f32.mrb[0].mxu0
        %v1137 = vpop.f32.mrb[0].mxu0
        %1138 = vdwg.mxu0
        %1139 = vrot.lane.b32.xlu0 %v638, 112
        %v1140 = vpop.permute.xlu0 %1139
        %1141 = vrot.lane.b32.xlu0 %v638, 80
        %v1142 = vpop.permute.xlu0 %1141
        %v1144 = vsel %vm642, %v1140, 0
        %v1147 = vsel %vm642, %v1142, 0
        %1149 = vmatprep.subr.bf16.mxu0 0
        %1150 = vmatpush1.bf16.xpose.msra.mxu0 %v1147
        %1151 = vmatprep.subr.bf16.mxu0 0
        %1152 = vmatpush1.bf16.xpose.msra.mxu0 0
        %1153 = vmatprep.subr.bf16.mxu0 0
        %1154 = vmatpush1.bf16.xpose.msra.mxu0 0
        %1155 = vmatprep.subr.bf16.mxu0 0
        %1156 = vmatpush1.bf16.xpose.msra.mxu0 0
        %1157 = vmatprep.subr.bf16.mxu0 0
        %1158 = vmatpush1.bf16.xpose.msra.mxu0 0
        %1159 = vmatprep.subr.bf16.mxu0 0
        %1160 = vmatpush1.bf16.xpose.msra.mxu0 0
        %1161 = vmatprep.subr.bf16.mxu0 0
        %1162 = vmatpush1.bf16.xpose.msra.mxu0 0
        %1163 = vmatprep.subr.bf16.mxu0 0
        %1164 = vmatpush1.bf16.xpose.msra.mxu0 0
        %1165 = vmatprep.subr.bf16.mxu0 0
        %1166 = vmatpush1.bf16.xpose.msra.mxu0 0
        %1167 = vmatprep.subr.bf16.mxu0 0
        %1168 = vmatpush1.bf16.xpose.msra.mxu0 0
        %1169 = vmatprep.subr.bf16.mxu0 0
        %1170 = vmatpush1.bf16.xpose.msra.mxu0 0
        %1171 = vmatprep.subr.bf16.mxu0 0
        %1172 = vmatpush1.bf16.xpose.msra.mxu0 0
        %1173 = vmatprep.subr.bf16.mxu0 0
        %1174 = vmatpush1.bf16.xpose.msra.mxu0 0
        %1175 = vmatprep.subr.bf16.mxu0 0
        %1176 = vmatpush1.bf16.xpose.msra.mxu0 0
        %1177 = vmatprep.subr.bf16.mxu0 0
        %1178 = vmatpush1.bf16.xpose.msra.mxu0 0
        %1179 = vmatprep.subr.bf16.mxu0 0
        %1180 = vmatpush1.bf16.xpose.msra.mxu0 0
        %1181 = vmatprep.mubr.bf16.mxu0 0
        %1182 = vmatmul.mubr.bf16.gmra.mrb[0].mxu0 %v1144
        %v1183 = vpop.f32.mrb[0].mxu0
        %v1184 = vadd.f32 0.0, %v1183
        %v1185 = vpop.f32.mrb[0].mxu0
        %v1186 = vpop.f32.mrb[0].mxu0
        %v1187 = vpop.f32.mrb[0].mxu0
        %1188 = vdwg.mxu0
        %v1189 = vmul.f32 %v1134, 0.35355338
        %v1190 = vmul.f32 %v1184, 0.35355338
        %v1191 = vsel %vm642, %v1189, -inf
        %1192 = vmax.xlane.f32.xlu0 %v1191
        %v1193 = vpop.xlane.xlu0 %1192
        %v1194 = vsel %vm642, %v1190, -inf
        %1195 = vmax.xlane.f32.xlu0 %v1194
        %v1196 = vpop.xlane.xlu0 %1195
        %v1197 = vsub.f32 %v1189, %v1193
        %v1198 = vsub.f32 %v1190, %v1196
        %v1199 = vmul.f32 %v1197, 1.442695
        %v1200 = vpow.pop %v1199
        %v1201 = vmul.f32 %v1198, 1.442695
        %v1202 = vpow.pop %v1201
        %v1203 = vsel %vm642, %v1200, 0.0
        %1204 = vadd.xlane.f32.xlu0 %v1203
        %v1205 = vpop.xlane.xlu0 %1204
        %v1206 = vsel %vm642, %v1202, 0.0
        %1207 = vadd.xlane.f32.xlu0 %v1206
        %v1208 = vpop.xlane.xlu0 %1207
        %v1209 = vrcp.pop %v1205
        %v1210 = vmul.f32 %v1200, %v1209
        %v1211 = vrcp.pop %v1208
        %v1212 = vmul.f32 %v1202, %v1211
        %v1213 = vpack.c.bf16 %v1210, %v1210
        %v1214 = vpack.c.bf16 %v1212, %v1212
        %s1215 = scalar_lea.vmem %s487, 8 [#allocation8]
        %1216 = vst.msk [vmem:[%s1215] sm:$0xf] %vm764, %v1213
        %1217 = vst.msk [vmem:[%s1215 + $0x10] sm:$0xf] %vm764, %v1214
        %1218 = vrot.lane.b32.xlu0 %v637, 48
        %v1219 = vpop.permute.xlu0 %1218
        %v1221 = vsel %vm642, %v1213, 0
        %v1224 = vsel %vm772, %v1219, 0
        %1226 = vmatprep.subr.bf16.mxu0 0
        %1227 = vmatpush1.bf16.msra.mxu0 %v1224
        %1228 = vmatprep.subr.bf16.mxu0 0
        %1229 = vmatpush1.bf16.msra.mxu0 0
        %1230 = vmatprep.subr.bf16.mxu0 0
        %1231 = vmatpush1.bf16.msra.mxu0 0
        %1232 = vmatprep.subr.bf16.mxu0 0
        %1233 = vmatpush1.bf16.msra.mxu0 0
        %1234 = vmatprep.subr.bf16.mxu0 0
        %1235 = vmatpush1.bf16.msra.mxu0 0
        %1236 = vmatprep.subr.bf16.mxu0 0
        %1237 = vmatpush1.bf16.msra.mxu0 0
        %1238 = vmatprep.subr.bf16.mxu0 0
        %1239 = vmatpush1.bf16.msra.mxu0 0
        %1240 = vmatprep.subr.bf16.mxu0 0
        %1241 = vmatpush1.bf16.msra.mxu0 0
        %1242 = vmatprep.subr.bf16.mxu0 0
        %1243 = vmatpush1.bf16.msra.mxu0 0
        %1244 = vmatprep.subr.bf16.mxu0 0
        %1245 = vmatpush1.bf16.msra.mxu0 0
        %1246 = vmatprep.subr.bf16.mxu0 0
        %1247 = vmatpush1.bf16.msra.mxu0 0
        %1248 = vmatprep.subr.bf16.mxu0 0
        %1249 = vmatpush1.bf16.msra.mxu0 0
        %1250 = vmatprep.subr.bf16.mxu0 0
        %1251 = vmatpush1.bf16.msra.mxu0 0
        %1252 = vmatprep.subr.bf16.mxu0 0
        %1253 = vmatpush1.bf16.msra.mxu0 0
        %1254 = vmatprep.subr.bf16.mxu0 0
        %1255 = vmatpush1.bf16.msra.mxu0 0
        %1256 = vmatprep.subr.bf16.mxu0 0
        %1257 = vmatpush1.bf16.msra.mxu0 0
        %1258 = vmatprep.mubr.bf16.mxu0 0
        %1259 = vmatmul.mubr.bf16.gmra.mrb[0].mxu0 %v1221
        %v1260 = vpop.f32.mrb[0].mxu0
        %v1261 = vadd.f32 0.0, %v1260
        %v1262 = vpop.f32.mrb[0].mxu0
        %v1263 = vpop.f32.mrb[0].mxu0
        %v1264 = vpop.f32.mrb[0].mxu0
        %1265 = vdwg.mxu0
        %1266 = vrot.lane.b32.xlu0 %v638, 48
        %v1267 = vpop.permute.xlu0 %1266
        %v1269 = vsel %vm642, %v1214, 0
        %v1272 = vsel %vm772, %v1267, 0
        %1274 = vmatprep.subr.bf16.mxu0 0
        %1275 = vmatpush1.bf16.msra.mxu0 %v1272
        %1276 = vmatprep.subr.bf16.mxu0 0
        %1277 = vmatpush1.bf16.msra.mxu0 0
        %1278 = vmatprep.subr.bf16.mxu0 0
        %1279 = vmatpush1.bf16.msra.mxu0 0
        %1280 = vmatprep.subr.bf16.mxu0 0
        %1281 = vmatpush1.bf16.msra.mxu0 0
        %1282 = vmatprep.subr.bf16.mxu0 0
        %1283 = vmatpush1.bf16.msra.mxu0 0
        %1284 = vmatprep.subr.bf16.mxu0 0
        %1285 = vmatpush1.bf16.msra.mxu0 0
        %1286 = vmatprep.subr.bf16.mxu0 0
        %1287 = vmatpush1.bf16.msra.mxu0 0
        %1288 = vmatprep.subr.bf16.mxu0 0
        %1289 = vmatpush1.bf16.msra.mxu0 0
        %1290 = vmatprep.subr.bf16.mxu0 0
        %1291 = vmatpush1.bf16.msra.mxu0 0
        %1292 = vmatprep.subr.bf16.mxu0 0
        %1293 = vmatpush1.bf16.msra.mxu0 0
        %1294 = vmatprep.subr.bf16.mxu0 0
        %1295 = vmatpush1.bf16.msra.mxu0 0
        %1296 = vmatprep.subr.bf16.mxu0 0
        %1297 = vmatpush1.bf16.msra.mxu0 0
        %1298 = vmatprep.subr.bf16.mxu0 0
        %1299 = vmatpush1.bf16.msra.mxu0 0
        %1300 = vmatprep.subr.bf16.mxu0 0
        %1301 = vmatpush1.bf16.msra.mxu0 0
        %1302 = vmatprep.subr.bf16.mxu0 0
        %1303 = vmatpush1.bf16.msra.mxu0 0
        %1304 = vmatprep.subr.bf16.mxu0 0
        %1305 = vmatpush1.bf16.msra.mxu0 0
        %1306 = vmatprep.mubr.bf16.mxu0 0
        %1307 = vmatmul.mubr.bf16.gmra.mrb[0].mxu0 %v1269
        %v1308 = vpop.f32.mrb[0].mxu0
        %v1309 = vadd.f32 0.0, %v1308
        %v1310 = vpop.f32.mrb[0].mxu0
        %v1311 = vpop.f32.mrb[0].mxu0
        %v1312 = vpop.f32.mrb[0].mxu0
        %1313 = vdwg.mxu0
        %1314 = vrot.lane.b32.xlu0 %v637, 104
        %v1315 = vpop.permute.xlu0 %1314
        %1316 = vrot.lane.b32.xlu0 %v637, 72
        %v1317 = vpop.permute.xlu0 %1316
        %v1319 = vsel %vm642, %v1315, 0
        %v1322 = vsel %vm642, %v1317, 0
        %1324 = vmatprep.subr.bf16.mxu0 0
        %1325 = vmatpush1.bf16.xpose.msra.mxu0 %v1322
        %1326 = vmatprep.subr.bf16.mxu0 0
        %1327 = vmatpush1.bf16.xpose.msra.mxu0 0
        %1328 = vmatprep.subr.bf16.mxu0 0
        %1329 = vmatpush1.bf16.xpose.msra.mxu0 0
        %1330 = vmatprep.subr.bf16.mxu0 0
        %1331 = vmatpush1.bf16.xpose.msra.mxu0 0
        %1332 = vmatprep.subr.bf16.mxu0 0
        %1333 = vmatpush1.bf16.xpose.msra.mxu0 0
        %1334 = vmatprep.subr.bf16.mxu0 0
        %1335 = vmatpush1.bf16.xpose.msra.mxu0 0
        %1336 = vmatprep.subr.bf16.mxu0 0
        %1337 = vmatpush1.bf16.xpose.msra.mxu0 0
        %1338 = vmatprep.subr.bf16.mxu0 0
        %1339 = vmatpush1.bf16.xpose.msra.mxu0 0
        %1340 = vmatprep.subr.bf16.mxu0 0
        %1341 = vmatpush1.bf16.xpose.msra.mxu0 0
        %1342 = vmatprep.subr.bf16.mxu0 0
        %1343 = vmatpush1.bf16.xpose.msra.mxu0 0
        %1344 = vmatprep.subr.bf16.mxu0 0
        %1345 = vmatpush1.bf16.xpose.msra.mxu0 0
        %1346 = vmatprep.subr.bf16.mxu0 0
        %1347 = vmatpush1.bf16.xpose.msra.mxu0 0
        %1348 = vmatprep.subr.bf16.mxu0 0
        %1349 = vmatpush1.bf16.xpose.msra.mxu0 0
        %1350 = vmatprep.subr.bf16.mxu0 0
        %1351 = vmatpush1.bf16.xpose.msra.mxu0 0
        %1352 = vmatprep.subr.bf16.mxu0 0
        %1353 = vmatpush1.bf16.xpose.msra.mxu0 0
        %1354 = vmatprep.subr.bf16.mxu0 0
        %1355 = vmatpush1.bf16.xpose.msra.mxu0 0
        %1356 = vmatprep.mubr.bf16.mxu0 0
        %1357 = vmatmul.mubr.bf16.gmra.mrb[0].mxu0 %v1319
        %v1358 = vpop.f32.mrb[0].mxu0
        %v1359 = vadd.f32 0.0, %v1358
        %v1360 = vpop.f32.mrb[0].mxu0
        %v1361 = vpop.f32.mrb[0].mxu0
        %v1362 = vpop.f32.mrb[0].mxu0
        %1363 = vdwg.mxu0
        %1364 = vrot.lane.b32.xlu0 %v638, 104
        %v1365 = vpop.permute.xlu0 %1364
        %1366 = vrot.lane.b32.xlu0 %v638, 72
        %v1367 = vpop.permute.xlu0 %1366
        %v1369 = vsel %vm642, %v1365, 0
        %v1372 = vsel %vm642, %v1367, 0
        %1374 = vmatprep.subr.bf16.mxu0 0
        %1375 = vmatpush1.bf16.xpose.msra.mxu0 %v1372
        %1376 = vmatprep.subr.bf16.mxu0 0
        %1377 = vmatpush1.bf16.xpose.msra.mxu0 0
        %1378 = vmatprep.subr.bf16.mxu0 0
        %1379 = vmatpush1.bf16.xpose.msra.mxu0 0
        %1380 = vmatprep.subr.bf16.mxu0 0
        %1381 = vmatpush1.bf16.xpose.msra.mxu0 0
        %1382 = vmatprep.subr.bf16.mxu0 0
        %1383 = vmatpush1.bf16.xpose.msra.mxu0 0
        %1384 = vmatprep.subr.bf16.mxu0 0
        %1385 = vmatpush1.bf16.xpose.msra.mxu0 0
        %1386 = vmatprep.subr.bf16.mxu0 0
        %1387 = vmatpush1.bf16.xpose.msra.mxu0 0
        %1388 = vmatprep.subr.bf16.mxu0 0
        %1389 = vmatpush1.bf16.xpose.msra.mxu0 0
        %1390 = vmatprep.subr.bf16.mxu0 0
        %1391 = vmatpush1.bf16.xpose.msra.mxu0 0
        %1392 = vmatprep.subr.bf16.mxu0 0
        %1393 = vmatpush1.bf16.xpose.msra.mxu0 0
        %1394 = vmatprep.subr.bf16.mxu0 0
        %1395 = vmatpush1.bf16.xpose.msra.mxu0 0
        %1396 = vmatprep.subr.bf16.mxu0 0
        %1397 = vmatpush1.bf16.xpose.msra.mxu0 0
        %1398 = vmatprep.subr.bf16.mxu0 0
        %1399 = vmatpush1.bf16.xpose.msra.mxu0 0
        %1400 = vmatprep.subr.bf16.mxu0 0
        %1401 = vmatpush1.bf16.xpose.msra.mxu0 0
        %1402 = vmatprep.subr.bf16.mxu0 0
        %1403 = vmatpush1.bf16.xpose.msra.mxu0 0
        %1404 = vmatprep.subr.bf16.mxu0 0
        %1405 = vmatpush1.bf16.xpose.msra.mxu0 0
        %1406 = vmatprep.mubr.bf16.mxu0 0
        %1407 = vmatmul.mubr.bf16.gmra.mrb[0].mxu0 %v1369
        %v1408 = vpop.f32.mrb[0].mxu0
        %v1409 = vadd.f32 0.0, %v1408
        %v1410 = vpop.f32.mrb[0].mxu0
        %v1411 = vpop.f32.mrb[0].mxu0
        %v1412 = vpop.f32.mrb[0].mxu0
        %1413 = vdwg.mxu0
        %v1414 = vmul.f32 %v1359, 0.35355338
        %v1415 = vmul.f32 %v1409, 0.35355338
        %v1416 = vsel %vm642, %v1414, -inf
        %1417 = vmax.xlane.f32.xlu0 %v1416
        %v1418 = vpop.xlane.xlu0 %1417
        %v1419 = vsel %vm642, %v1415, -inf
        %1420 = vmax.xlane.f32.xlu0 %v1419
        %v1421 = vpop.xlane.xlu0 %1420
        %v1422 = vsub.f32 %v1414, %v1418
        %v1423 = vsub.f32 %v1415, %v1421
        %v1424 = vmul.f32 %v1422, 1.442695
        %v1425 = vpow.pop %v1424
        %v1426 = vmul.f32 %v1423, 1.442695
        %v1427 = vpow.pop %v1426
        %v1428 = vsel %vm642, %v1425, 0.0
        %1429 = vadd.xlane.f32.xlu0 %v1428
        %v1430 = vpop.xlane.xlu0 %1429
        %v1431 = vsel %vm642, %v1427, 0.0
        %1432 = vadd.xlane.f32.xlu0 %v1431
        %v1433 = vpop.xlane.xlu0 %1432
        %v1434 = vrcp.pop %v1430
        %v1435 = vmul.f32 %v1425, %v1434
        %v1436 = vrcp.pop %v1433
        %v1437 = vmul.f32 %v1427, %v1436
        %v1438 = vpack.c.bf16 %v1435, %v1435
        %v1439 = vpack.c.bf16 %v1437, %v1437
        %s1440 = scalar_lea.vmem %s487, 12 [#allocation8]
        %1441 = vst.msk [vmem:[%s1440] sm:$0xf] %vm764, %v1438
        %1442 = vst.msk [vmem:[%s1440 + $0x10] sm:$0xf] %vm764, %v1439
        %1443 = vrot.lane.b32.xlu0 %v637, 40
        %v1444 = vpop.permute.xlu0 %1443
        %v1446 = vsel %vm642, %v1438, 0
        %v1449 = vsel %vm772, %v1444, 0
        %1451 = vmatprep.subr.bf16.mxu0 0
        %1452 = vmatpush1.bf16.msra.mxu0 %v1449
        %1453 = vmatprep.subr.bf16.mxu0 0
        %1454 = vmatpush1.bf16.msra.mxu0 0
        %1455 = vmatprep.subr.bf16.mxu0 0
        %1456 = vmatpush1.bf16.msra.mxu0 0
        %1457 = vmatprep.subr.bf16.mxu0 0
        %1458 = vmatpush1.bf16.msra.mxu0 0
        %1459 = vmatprep.subr.bf16.mxu0 0
        %1460 = vmatpush1.bf16.msra.mxu0 0
        %1461 = vmatprep.subr.bf16.mxu0 0
        %1462 = vmatpush1.bf16.msra.mxu0 0
        %1463 = vmatprep.subr.bf16.mxu0 0
        %1464 = vmatpush1.bf16.msra.mxu0 0
        %1465 = vmatprep.subr.bf16.mxu0 0
        %1466 = vmatpush1.bf16.msra.mxu0 0
        %1467 = vmatprep.subr.bf16.mxu0 0
        %1468 = vmatpush1.bf16.msra.mxu0 0
        %1469 = vmatprep.subr.bf16.mxu0 0
        %1470 = vmatpush1.bf16.msra.mxu0 0
        %1471 = vmatprep.subr.bf16.mxu0 0
        %1472 = vmatpush1.bf16.msra.mxu0 0
        %1473 = vmatprep.subr.bf16.mxu0 0
        %1474 = vmatpush1.bf16.msra.mxu0 0
        %1475 = vmatprep.subr.bf16.mxu0 0
        %1476 = vmatpush1.bf16.msra.mxu0 0
        %1477 = vmatprep.subr.bf16.mxu0 0
        %1478 = vmatpush1.bf16.msra.mxu0 0
        %1479 = vmatprep.subr.bf16.mxu0 0
        %1480 = vmatpush1.bf16.msra.mxu0 0
        %1481 = vmatprep.subr.bf16.mxu0 0
        %1482 = vmatpush1.bf16.msra.mxu0 0
        %1483 = vmatprep.mubr.bf16.mxu0 0
        %1484 = vmatmul.mubr.bf16.gmra.mrb[0].mxu0 %v1446
        %v1485 = vpop.f32.mrb[0].mxu0
        %v1486 = vadd.f32 0.0, %v1485
        %v1487 = vpop.f32.mrb[0].mxu0
        %v1488 = vpop.f32.mrb[0].mxu0
        %v1489 = vpop.f32.mrb[0].mxu0
        %1490 = vdwg.mxu0
        %1491 = vrot.lane.b32.xlu0 %v638, 40
        %v1492 = vpop.permute.xlu0 %1491
        %v1494 = vsel %vm642, %v1439, 0
        %v1497 = vsel %vm772, %v1492, 0
        %1499 = vmatprep.subr.bf16.mxu0 0
        %1500 = vmatpush1.bf16.msra.mxu0 %v1497
        %1501 = vmatprep.subr.bf16.mxu0 0
        %1502 = vmatpush1.bf16.msra.mxu0 0
        %1503 = vmatprep.subr.bf16.mxu0 0
        %1504 = vmatpush1.bf16.msra.mxu0 0
        %1505 = vmatprep.subr.bf16.mxu0 0
        %1506 = vmatpush1.bf16.msra.mxu0 0
        %1507 = vmatprep.subr.bf16.mxu0 0
        %1508 = vmatpush1.bf16.msra.mxu0 0
        %1509 = vmatprep.subr.bf16.mxu0 0
        %1510 = vmatpush1.bf16.msra.mxu0 0
        %1511 = vmatprep.subr.bf16.mxu0 0
        %1512 = vmatpush1.bf16.msra.mxu0 0
        %1513 = vmatprep.subr.bf16.mxu0 0
        %1514 = vmatpush1.bf16.msra.mxu0 0
        %1515 = vmatprep.subr.bf16.mxu0 0
        %1516 = vmatpush1.bf16.msra.mxu0 0
        %1517 = vmatprep.subr.bf16.mxu0 0
        %1518 = vmatpush1.bf16.msra.mxu0 0
        %1519 = vmatprep.subr.bf16.mxu0 0
        %1520 = vmatpush1.bf16.msra.mxu0 0
        %1521 = vmatprep.subr.bf16.mxu0 0
        %1522 = vmatpush1.bf16.msra.mxu0 0
        %1523 = vmatprep.subr.bf16.mxu0 0
        %1524 = vmatpush1.bf16.msra.mxu0 0
        %1525 = vmatprep.subr.bf16.mxu0 0
        %1526 = vmatpush1.bf16.msra.mxu0 0
        %1527 = vmatprep.subr.bf16.mxu0 0
        %1528 = vmatpush1.bf16.msra.mxu0 0
        %1529 = vmatprep.subr.bf16.mxu0 0
        %1530 = vmatpush1.bf16.msra.mxu0 0
        %1531 = vmatprep.mubr.bf16.mxu0 0
        %1532 = vmatmul.mubr.bf16.gmra.mrb[0].mxu0 %v1494
        %v1533 = vpop.f32.mrb[0].mxu0
        %v1534 = vadd.f32 0.0, %v1533
        %v1535 = vpop.f32.mrb[0].mxu0
        %v1536 = vpop.f32.mrb[0].mxu0
        %v1537 = vpop.f32.mrb[0].mxu0
        %1538 = vdwg.mxu0
        %1541 = vrot.lane.b32.xlu0 %v1036, 8
        %v1542 = vpop.permute.xlu0 %1541
        %1543 = vrot.lane.b32.xlu0 %v1084, 8
        %v1544 = vpop.permute.xlu0 %1543
        %1549 = vrot.lane.b32.xlu0 %v1261, 16
        %v1550 = vpop.permute.xlu0 %1549
        %1551 = vrot.lane.b32.xlu0 %v1309, 16
        %v1552 = vpop.permute.xlu0 %1551
        %1557 = vrot.lane.b32.xlu0 %v1486, 24
        %v1558 = vpop.permute.xlu0 %1557
        %1559 = vrot.lane.b32.xlu0 %v1534, 24
        %v1560 = vpop.permute.xlu0 %1559
        %v1563 = vsel %vm642, %v811, %v1542
        %v1564 = vsel %vm642, %v859, %v1544
        %vm1565 = vcmask 130048
        %v1566 = vsel %vm1565, %v1563, %v1550
        %v1567 = vsel %vm1565, %v1564, %v1552
        %vm1568 = vcmask 195584
        %v1569 = vsel %vm1568, %v1566, %v1558
        %v1570 = vsel %vm1568, %v1567, %v1560
        %v1571 = vpack.c.bf16 %v1570, %v1569
        %v1572 = vld [vmem:[%s501] sm:$0xf]
        %v1573 = vld [vmem:[%s501 + $0x4] sm:$0xf]
        %v1574 = vld [vmem:[%s501 + $0x8] sm:$0xf]
        %v1575 = vld [vmem:[%s501 + $0xc] sm:$0xf]
        %v1576 = vld [vmem:[%s504] sm:$0x1]
        %v1578 = vlaneseq
        %v1579 = vshrl.u32 %v1578, 7
        %v1580 = vsub.s32 0, %v1579
        %v1581 = vrot.slane %v1576, %v1580
        %v1587 = vunpack.c.l.b16 %v1572
        %v1588 = vunpack.c.l.b16 %v1573
        %v1589 = vunpack.c.l.b16 %v1574
        %v1590 = vunpack.c.l.b16 %v1575
        %v1591 = vpack.c.b16 %v1588, %v1587
        %v1592 = vpack.c.b16 %v1590, %v1589
        %v1596 = vsel %vm539, %v1571, 0
        %1598 = vmatprep.subr.bf16.mxu0 0
        %1599 = vmatpush1.bf16.msra.mxu0 %v1591
        %1600 = vmatprep.subr.bf16.mxu0 0
        %1601 = vmatpush1.bf16.msra.mxu0 %v1592
        %1602 = vmatprep.subr.bf16.mxu0 0
        %1603 = vmatpush1.bf16.msra.mxu0 0
        %1604 = vmatprep.subr.bf16.mxu0 0
        %1605 = vmatpush1.bf16.msra.mxu0 0
        %1606 = vmatprep.subr.bf16.mxu0 0
        %1607 = vmatpush1.bf16.msra.mxu0 0
        %1608 = vmatprep.subr.bf16.mxu0 0
        %1609 = vmatpush1.bf16.msra.mxu0 0
        %1610 = vmatprep.subr.bf16.mxu0 0
        %1611 = vmatpush1.bf16.msra.mxu0 0
        %1612 = vmatprep.subr.bf16.mxu0 0
        %1613 = vmatpush1.bf16.msra.mxu0 0
        %1614 = vmatprep.subr.bf16.mxu0 0
        %1615 = vmatpush1.bf16.msra.mxu0 0
        %1616 = vmatprep.subr.bf16.mxu0 0
        %1617 = vmatpush1.bf16.msra.mxu0 0
        %1618 = vmatprep.subr.bf16.mxu0 0
        %1619 = vmatpush1.bf16.msra.mxu0 0
        %1620 = vmatprep.subr.bf16.mxu0 0
        %1621 = vmatpush1.bf16.msra.mxu0 0
        %1622 = vmatprep.subr.bf16.mxu0 0
        %1623 = vmatpush1.bf16.msra.mxu0 0
        %1624 = vmatprep.subr.bf16.mxu0 0
        %1625 = vmatpush1.bf16.msra.mxu0 0
        %1626 = vmatprep.subr.bf16.mxu0 0
        %1627 = vmatpush1.bf16.msra.mxu0 0
        %1628 = vmatprep.subr.bf16.mxu0 0
        %1629 = vmatpush1.bf16.msra.mxu0 0
        %1630 = vmatprep.mubr.bf16.mxu0 0
        %1631 = vmatmul.mubr.bf16.gmra.mrb[0].mxu0 %v1596
        %v1632 = vpop.f32.mrb[0].mxu0
        %v1633 = vadd.f32 %v1581, %v1632
        %v1634 = vpop.f32.mrb[0].mxu0
        %v1635 = vpop.f32.mrb[0].mxu0
        %v1636 = vadd.f32 %v1581, %v1635
        %v1637 = vpop.f32.mrb[0].mxu0
        %1638 = vdwg.mxu0
        %v1639 = vadd.f32 %v567, %v1633
        %v1640 = vadd.f32 %v568, %v1636
        %s1641 = sadd.s32 %s535, 1
        %s1642 = sld [smem:[#allocation3 + %s1641]]
        %v1643 = vmul.f32 %v1639, %v1639
        %v1644 = vmul.f32 %v1640, %v1640
        %v1645 = vsel %vm539, %v1643, 0.0
        %1646 = vadd.xlane.f32.xlu0 %v1645
        %v1647 = vpop.xlane.xlu0 %1646
        %v1648 = vsel %vm539, %v1644, 0.0
        %1649 = vadd.xlane.f32.xlu0 %v1648
        %v1650 = vpop.xlane.xlu0 %1649
        %v1651 = vrsqrt.pop %v1647
        %v1652 = vmul.f32 %v1647, %v1651
        %vm1653 = vcmp.eq.f32.partialorder %v1647, inf
        %v1654 = vsel %vm1653, %v1647, %v1652
        %vm1655 = vcmp.eq.f32.partialorder %v1647, 0.0
        %v1656 = vand.u32 %v1647, 2147483648
        %v1657 = vsel %vm1655, %v1656, %v1654
        %v1658 = vrsqrt.pop %v1650
        %v1659 = vmul.f32 %v1650, %v1658
        %vm1660 = vcmp.eq.f32.partialorder %v1650, inf
        %v1661 = vsel %vm1660, %v1650, %v1659
        %vm1662 = vcmp.eq.f32.partialorder %v1650, 0.0
        %v1663 = vand.u32 %v1650, 2147483648
        %v1664 = vsel %vm1662, %v1663, %v1661
        %v1665 = vmax.f32 %v1657, 1e-05
        %v1666 = vmax.f32 %v1664, 1e-05
        %v1667 = vstv %s1642
        %v1668 = vrcp.pop %v1665
        %v1669 = vmul.f32 %v1667, %v1668
        %v1670 = vrcp.pop %v1666
        %v1671 = vmul.f32 %v1667, %v1670
        %v1672 = vmul.f32 %v1639, %v1669
        %v1673 = vmul.f32 %v1640, %v1671
        %v1674 = vpack.c.bf16 %v1673, %v1672
        %v1675 = vld [vmem:[%s509] sm:$0xf]
        %v1676 = vld [vmem:[%s509 + $0x4] sm:$0xf]
        %v1677 = vld [vmem:[%s509 + $0x8] sm:$0xf]
        %v1678 = vld [vmem:[%s509 + $0xc] sm:$0xf]
        %v1679 = vld [vmem:[%s512] sm:$0x1]
        %v1681 = vlaneseq
        %v1682 = vshrl.u32 %v1681, 7
        %v1683 = vsub.s32 0, %v1682
        %v1684 = vrot.slane %v1679, %v1683
        %v1690 = vunpack.c.l.b16 %v1675
        %v1691 = vunpack.c.l.b16 %v1676
        %v1692 = vunpack.c.l.b16 %v1677
        %v1693 = vunpack.c.l.b16 %v1678
        %v1694 = vpack.c.b16 %v1691, %v1690
        %v1695 = vpack.c.b16 %v1693, %v1692
        %v1699 = vsel %vm539, %v1674, 0
        %1701 = vmatprep.subr.bf16.mxu0 0
        %1702 = vmatpush1.bf16.msra.mxu0 %v1694
        %1703 = vmatprep.subr.bf16.mxu0 0
        %1704 = vmatpush1.bf16.msra.mxu0 %v1695
        %1705 = vmatprep.subr.bf16.mxu0 0
        %1706 = vmatpush1.bf16.msra.mxu0 0
        %1707 = vmatprep.subr.bf16.mxu0 0
        %1708 = vmatpush1.bf16.msra.mxu0 0
        %1709 = vmatprep.subr.bf16.mxu0 0
        %1710 = vmatpush1.bf16.msra.mxu0 0
        %1711 = vmatprep.subr.bf16.mxu0 0
        %1712 = vmatpush1.bf16.msra.mxu0 0
        %1713 = vmatprep.subr.bf16.mxu0 0
        %1714 = vmatpush1.bf16.msra.mxu0 0
        %1715 = vmatprep.subr.bf16.mxu0 0
        %1716 = vmatpush1.bf16.msra.mxu0 0
        %1717 = vmatprep.subr.bf16.mxu0 0
        %1718 = vmatpush1.bf16.msra.mxu0 0
        %1719 = vmatprep.subr.bf16.mxu0 0
        %1720 = vmatpush1.bf16.msra.mxu0 0
        %1721 = vmatprep.subr.bf16.mxu0 0
        %1722 = vmatpush1.bf16.msra.mxu0 0
        %1723 = vmatprep.subr.bf16.mxu0 0
        %1724 = vmatpush1.bf16.msra.mxu0 0
        %1725 = vmatprep.subr.bf16.mxu0 0
        %1726 = vmatpush1.bf16.msra.mxu0 0
        %1727 = vmatprep.subr.bf16.mxu0 0
        %1728 = vmatpush1.bf16.msra.mxu0 0
        %1729 = vmatprep.subr.bf16.mxu0 0
        %1730 = vmatpush1.bf16.msra.mxu0 0
        %1731 = vmatprep.subr.bf16.mxu0 0
        %1732 = vmatpush1.bf16.msra.mxu0 0
        %1733 = vmatprep.mubr.bf16.mxu0 0
        %1734 = vmatmul.mubr.bf16.gmra.mrb[0].mxu0 %v1699
        %v1735 = vpop.f32.mrb[0].mxu0
        %v1736 = vadd.f32 %v1684, %v1735
        %v1737 = vpop.f32.mrb[0].mxu0
        %v1738 = vpop.f32.mrb[0].mxu0
        %v1739 = vadd.f32 %v1684, %v1738
        %v1740 = vpop.f32.mrb[0].mxu0
        %1741 = vdwg.mxu0
        %v1742 = vmax.f32 %v1736, 0.0
        %v1743 = vmax.f32 %v1739, 0.0
        %v1744 = vpack.c.bf16 %v1743, %v1742
        %v1745 = vld [vmem:[%s517] sm:$0xf]
        %v1746 = vld [vmem:[%s517 + $0x4] sm:$0xf]
        %v1747 = vld [vmem:[%s517 + $0x8] sm:$0xf]
        %v1748 = vld [vmem:[%s517 + $0xc] sm:$0xf]
        %v1749 = vld [vmem:[%s517 + $0x10] sm:$0xf]
        %v1750 = vld [vmem:[%s517 + $0x14] sm:$0xf]
        %v1751 = vld [vmem:[%s517 + $0x18] sm:$0xf]
        %v1752 = vld [vmem:[%s517 + $0x1c] sm:$0xf]
        %v1753 = vld [vmem:[%s520] sm:$0x1]
        %v1755 = vlaneseq
        %v1756 = vshrl.u32 %v1755, 7
        %v1757 = vsub.s32 0, %v1756
        %v1758 = vrot.slane %v1753, %v1757
        %v1768 = vunpack.c.l.b16 %v1745
        %v1769 = vunpack.c.l.b16 %v1746
        %v1770 = vunpack.c.l.b16 %v1747
        %v1771 = vunpack.c.l.b16 %v1748
        %v1772 = vunpack.c.l.b16 %v1749
        %v1773 = vunpack.c.l.b16 %v1750
        %v1774 = vunpack.c.l.b16 %v1751
        %v1775 = vunpack.c.l.b16 %v1752
        %v1776 = vpack.c.b16 %v1769, %v1768
        %v1777 = vpack.c.b16 %v1771, %v1770
        %v1778 = vpack.c.b16 %v1773, %v1772
        %v1779 = vpack.c.b16 %v1775, %v1774
        %vm1784 = vcmask 523264
        %v1786 = vsel %vm1784, %v1744, 0
        %1788 = vmatprep.subr.bf16.mxu0 0
        %1789 = vmatpush1.bf16.msra.mxu0 %v1776
        %1790 = vmatprep.subr.bf16.mxu0 0
        %1791 = vmatpush1.bf16.msra.mxu0 %v1777
        %1792 = vmatprep.subr.bf16.mxu0 0
        %1793 = vmatpush1.bf16.msra.mxu0 %v1778
        %1794 = vmatprep.subr.bf16.mxu0 0
        %1795 = vmatpush1.bf16.msra.mxu0 %v1779
        %1796 = vmatprep.subr.bf16.mxu0 0
        %1797 = vmatpush1.bf16.msra.mxu0 0
        %1798 = vmatprep.subr.bf16.mxu0 0
        %1799 = vmatpush1.bf16.msra.mxu0 0
        %1800 = vmatprep.subr.bf16.mxu0 0
        %1801 = vmatpush1.bf16.msra.mxu0 0
        %1802 = vmatprep.subr.bf16.mxu0 0
        %1803 = vmatpush1.bf16.msra.mxu0 0
        %1804 = vmatprep.subr.bf16.mxu0 0
        %1805 = vmatpush1.bf16.msra.mxu0 0
        %1806 = vmatprep.subr.bf16.mxu0 0
        %1807 = vmatpush1.bf16.msra.mxu0 0
        %1808 = vmatprep.subr.bf16.mxu0 0
        %1809 = vmatpush1.bf16.msra.mxu0 0
        %1810 = vmatprep.subr.bf16.mxu0 0
        %1811 = vmatpush1.bf16.msra.mxu0 0
        %1812 = vmatprep.subr.bf16.mxu0 0
        %1813 = vmatpush1.bf16.msra.mxu0 0
        %1814 = vmatprep.subr.bf16.mxu0 0
        %1815 = vmatpush1.bf16.msra.mxu0 0
        %1816 = vmatprep.subr.bf16.mxu0 0
        %1817 = vmatpush1.bf16.msra.mxu0 0
        %1818 = vmatprep.subr.bf16.mxu0 0
        %1819 = vmatpush1.bf16.msra.mxu0 0
        %1820 = vmatprep.mubr.bf16.mxu0 0
        %1821 = vmatmul.mubr.bf16.gmra.mrb[0].mxu0 %v1786
        %v1822 = vpop.f32.mrb[0].mxu0
        %v1823 = vadd.f32 %v1758, %v1822
        %v1824 = vpop.f32.mrb[0].mxu0
        %v1825 = vpop.f32.mrb[0].mxu0
        %v1826 = vadd.f32 %v1758, %v1825
        %v1827 = vpop.f32.mrb[0].mxu0
        %1828 = vdwg.mxu0
        %v1829 = vadd.f32 %v1672, %v1823
        %v1830 = vadd.f32 %v1673, %v1826
        %p1831 = scmp.lt.s32.totalorder %s37, 1
        // Predicated region
        $region65: #{tpu_custom_call.1} parent=55 // pred_check
          %p1832 = pneg %p1831
        $region66: #{tpu_custom_call.1} parent=55 // pred_check_branch
          %1834 = sbr.rel (%p1832) target = $region68
        $region67: #{tpu_custom_call.1} parent=55 // pred_region
          %1835 = vst.msk [vmem:[#allocation7] sm:$0xff] %vm539, %v1829
          %1836 = vst.msk [vmem:[#allocation7 + $0x8] sm:$0xff] %vm539, %v1830
        $region68: #{tpu_custom_call.1} parent=55 // pred_fallthru
          _
        %p1837 = scmp.eq.s32.totalorder %s37, 1
        // Predicated region
        $region69: #{tpu_custom_call.1} parent=55 // pred_check
          %p1838 = pneg %p1837
        $region70: #{tpu_custom_call.1} parent=55 // pred_check_branch
          %1840 = sbr.rel (%p1838) target = $region72
        $region71: #{tpu_custom_call.1} parent=55 // pred_region
          %v1841 = vmul.f32 %v1829, %v1829
          %v1842 = vmul.f32 %v1830, %v1830
          %v1843 = vsel %vm539, %v1841, 0.0
          %1844 = vadd.xlane.f32.xlu0 %v1843
          %v1845 = vpop.xlane.xlu0 %1844
          %v1846 = vsel %vm539, %v1842, 0.0
          %1847 = vadd.xlane.f32.xlu0 %v1846
          %v1848 = vpop.xlane.xlu0 %1847
          %v1849 = vrsqrt.pop %v1845
          %v1850 = vmul.f32 %v1845, %v1849
          %vm1851 = vcmp.eq.f32.partialorder %v1845, inf
          %v1852 = vsel %vm1851, %v1845, %v1850
          %vm1853 = vcmp.eq.f32.partialorder %v1845, 0.0
          %v1854 = vand.u32 %v1845, 2147483648
          %v1855 = vsel %vm1853, %v1854, %v1852
          %v1856 = vrsqrt.pop %v1848
          %v1857 = vmul.f32 %v1848, %v1856
          %vm1858 = vcmp.eq.f32.partialorder %v1848, inf
          %v1859 = vsel %vm1858, %v1848, %v1857
          %vm1860 = vcmp.eq.f32.partialorder %v1848, 0.0
          %v1861 = vand.u32 %v1848, 2147483648
          %v1862 = vsel %vm1860, %v1861, %v1859
          %v1863 = vmax.f32 %v1855, 1e-05
          %v1864 = vmax.f32 %v1862, 1e-05
          %v1865 = vrcp.pop %v1863
          %v1866 = vmul.f32 5.656854, %v1865
          %v1867 = vrcp.pop %v1864
          %v1868 = vmul.f32 5.656854, %v1867
          %v1869 = vmul.f32 %v1829, %v1866
          %v1870 = vmul.f32 %v1830, %v1868
          %1871 = vst.msk [vmem:[#allocation7] sm:$0xff] %vm539, %v1869
          %1872 = vst.msk [vmem:[#allocation7 + $0x8] sm:$0xff] %vm539, %v1870
        $region72: #{tpu_custom_call.1} parent=55 // pred_fallthru
          _
        %s1873 = sand.u32 %s314, 1
        %s1874 = scalar_lea.sflag [#allocation9], %s1873
        %s1875 = sand.u32 %s314, 1
        %s1876 = smul.addr %s1875, 32
        %s1877 = scalar_lea.vmem [#allocation8], %s1876
        // Predicated region
        $region73: #{tpu_custom_call.1} parent=55 // pred_check
          %p1878 = pneg %p296
        $region74: #{tpu_custom_call.1} parent=55 // pred_check_branch
          %1880 = sbr.rel (%p1878) target = $region76
        $region75: #{tpu_custom_call.1} parent=55 // pred_region
          %s1881 = smul.u32 2, %s36
          %s1883 = ssub.s32 256, 256
          %1884 = vsyncadd [#allocation6], %s1883
          %s1885 = smul.addr %s1881, 128
          %s1886 = scalar_lea.hbm %s10, %s1885
          %s1887 = sshll.u32 [#allocation7], 4
          %s1888 = int_to_ptr.vmem [resolvable:$true] %s1887
          %1893 = dma.vmem_to_hbm [thread:$0]  %s1888, 256, %s1886, [#allocation6], 128, 128, 8
        $region76: #{tpu_custom_call.1} parent=55 // pred_fallthru
          _
        // Predicated region
        $region77: #{tpu_custom_call.1} parent=55 // pred_check
          %p1894 = pneg %p324
        $region78: #{tpu_custom_call.1} parent=55 // pred_check_branch
          %1896 = sbr.rel (%p1894) target = $region80
        $region79: #{tpu_custom_call.1} parent=55 // pred_region
          %s1897 = smul.u32 2, %s36
          %s1899 = ssub.s32 512, 512
          %1900 = vsyncadd %s1874, %s1899
          %s1901 = smul.addr %s1897, 4
          %s1902 = smul.addr %s37, 8
          %s1903 = sadd.s32 %s1901, %s1902
          %s1904 = smul.addr %s1903, 64
          %s1905 = scalar_lea.hbm %s11, %s1904
          %s1906 = sshll.u32 %s1877, 4
          %s1907 = int_to_ptr.vmem [resolvable:$true] %s1906
          %1912 = dma.vmem_to_hbm [thread:$0]  %s1907, 512, %s1905, %s1874, 64, 64, 4
        $region80: #{tpu_custom_call.1} parent=55 // pred_fallthru
          _
        // Predicated region
        $region81: #{tpu_custom_call.1} parent=55 // pred_check
          %p1913 = pneg %p296
        $region82: #{tpu_custom_call.1} parent=55 // pred_check_branch
          %1915 = sbr.rel (%p1913) target = $region84
        $region83: #{tpu_custom_call.1} parent=55 // pred_region
          %1916 = dma.done [#allocation6], 256
        $region84: #{tpu_custom_call.1} parent=55 // pred_fallthru
          _
      $region56: #{tpu_custom_call.1} parent=5 // pred_fallthru
        _
      %p1917 = scmp.le.s32.totalorder 2, %s27
      // Predicated region
      $region85: #{tpu_custom_call.1} parent=5 // pred_check
        %p1918 = pneg %p1917
      $region86: #{tpu_custom_call.1} parent=5 // pred_check_branch
        %1920 = sbr.rel (%p1918) target = $region88
      $region87: #{tpu_custom_call.1} parent=5 // pred_region
        %s1921 = ssub.s32 %s27, 2
        // Predicated region
        $region89: #{tpu_custom_call.1} parent=87 // pred_check
          %p1922 = pneg %p330
        $region90: #{tpu_custom_call.1} parent=87 // pred_check_branch
          %1924 = sbr.rel (%p1922) target = $region92
        $region91: #{tpu_custom_call.1} parent=87 // pred_region
          %s1925 = sand.u32 %s315, 1
          %s1926 = scalar_lea.sflag [#allocation9], %s1925
          %s1927 = sand.u32 %s315, 1
          %s1928 = smul.addr %s1927, 32
          %s1929 = scalar_lea.vmem [#allocation8], %s1928
          %1930 = dma.done %s1926, 512
        $region92: #{tpu_custom_call.1} parent=87 // pred_fallthru
          _
      $region88: #{tpu_custom_call.1} parent=5 // pred_fallthru
        _
    $region6: #{tpu_custom_call.1} parent=1 // loop_footer
      %s31 = sadd.s32 1, %s27
    $region7: #{tpu_custom_call.1} parent=1 // loop_footer_branch
      %26 = sbr.rel target = $region3
    $region8: #{tpu_custom_call.1} parent=1 // loop_exit
      _
    %1931 = vsyncpa [#allocation5], 1
    %s1932 = scalar_lea.sflag [#allocation5], 1
    %1933 = vsyncpa %s1932, 1
    %1934 = vsyncpa [#allocation6], 1
    %s1935 = scalar_lea.sflag [#allocation6], 1
    %1936 = vsyncpa %s1935, 1
    %1937 = vsyncpa [#allocation9], 1
    %s1938 = scalar_lea.sflag [#allocation9], 1
    %1939 = vsyncpa %s1938, 1

</llo_original>
